<compile_context>
chip_gen: v7x
topology: tpu7x:2x2x1
jax: 0.10.0
libtpu: 0.0.40
codegen_flags: <defaults>
</compile_context>

<pallas_src>
from functools import partial

import jax
import jax.numpy as jnp
from jax import lax
from jax.experimental import pallas as pl
from jax.experimental.pallas import tpu as pltpu


def _round_up(x, m):
    return (x + m - 1) // m * m


def _cdiv(a, b):
    return -(-a // b)


def _conv_kernel(x_ref, w_ref, b_ref, o_ref, *,
                 C, OC, KH, KW, OW, RB, n_chunks, tail_rows):
    """One grid step = (image n, row-chunk r) -> output rows [r*RB, r*RB+RB).

    x_ref: (C, H, W)        full input image (resident across the chunk axis)
    w_ref: (OC*C*KH*KW,)    flattened conv weights in SMEM (scalar reads)
    b_ref: (OC,)            bias in SMEM
    o_ref: (OC, RB, OW)     output row-chunk (last block may be partial)
    """

    def row_group(in_row0, out_row0, nrows):
        # nrows (<= 8) is static; in_row0 / out_row0 may be traced.
        accs = [jnp.full((nrows, OW), b_ref[oc], dtype=jnp.float32)
                for oc in range(OC)]
        for ch in range(C):
            for i in range(KH):
                for j in range(KW):
                    xs = x_ref[ch, pl.ds(in_row0 + i, nrows), pl.ds(j, OW)]
                    xs = xs.astype(jnp.float32)
                    for oc in range(OC):
                        widx = ((oc * C + ch) * KH + i) * KW + j
                        accs[oc] = accs[oc] + w_ref[widx] * xs
        for oc in range(OC):
            o_ref[oc, pl.ds(out_row0, nrows), :] = accs[oc].astype(o_ref.dtype)

    r = pl.program_id(1)

    def full_chunk():
        in_base = pl.multiple_of(r * RB, 8)

        def body(sub, carry):
            rs = pl.multiple_of(sub * 8, 8)
            row_group(in_base + rs, rs, 8)
            return carry

        lax.fori_loop(0, RB // 8, body, 0)

    def tail_chunk():
        base = (n_chunks - 1) * RB            # static
        off = 0
        while off < tail_rows:
            g = min(8, tail_rows - off)
            row_group(base + off, off, g)
            off += g

    if n_chunks == 1:
        # Single chunk covers all output rows; everything is static.
        off = 0
        while off < RB:
            g = min(8, RB - off)
            row_group(off, off, g)
            off += g
    elif tail_rows == RB:
        full_chunk()                          # RB divides OH: all chunks full
    else:
        pl.when(r < n_chunks - 1)(full_chunk)
        pl.when(r == n_chunks - 1)(tail_chunk)


@jax.jit
def conv2d_pallas(x_nchw, weight_ocikk, bias_oc):
    """Equivalent of nn.Conv2d(C_in, C_out, K) forward (stride 1, no pad)."""
    N, C, H, W = x_nchw.shape
    OC, C2, KH, KW = weight_ocikk.shape
    assert C2 == C
    OH, OW = H - KH + 1, W - KW + 1

    # Row-chunking: RB output rows per grid step.  A multiple of 8 (sublane
    # group), ~4 chunks per image, capped so the per-step output block stays
    # small on v7x's 64 MiB VMEM while being big enough to amortize the
    # ~0.35 us per-grid-step overhead.
    if OH <= 8:
        RB = OH
    else:
        RB = min(128, _round_up(_cdiv(OH, 4), 8))
    n_chunks = _cdiv(OH, RB)
    tail_rows = OH - (n_chunks - 1) * RB

    w_flat = weight_ocikk.reshape(-1).astype(jnp.float32)   # (OC*C*KH*KW,)
    b_vec = bias_oc.astype(jnp.float32)                     # (OC,)

    kernel = partial(_conv_kernel, C=C, OC=OC, KH=KH, KW=KW, OW=OW,
                     RB=RB, n_chunks=n_chunks, tail_rows=tail_rows)

    flops = 2 * N * OH * OW * OC * KH * KW * C
    bytes_accessed = 4 * (x_nchw.size + N * OC * OH * OW
                          + w_flat.size + b_vec.size)

    out = pl.pallas_call(
        kernel,
        out_shape=jax.ShapeDtypeStruct((N, OC, OH, OW), x_nchw.dtype),
        grid=(N, n_chunks),
        in_specs=[
            # Full image per step; constant block index along the chunk axis
            # so it is not re-DMA'd across chunks.
            pl.BlockSpec((None, C, H, W), lambda n, r: (n, 0, 0, 0)),
            # Tiny weight / bias vectors live in SMEM (scalar reads).
            pl.BlockSpec(memory_space=pltpu.MemorySpace.SMEM),
            pl.BlockSpec(memory_space=pltpu.MemorySpace.SMEM),
        ],
        out_specs=pl.BlockSpec((None, OC, RB, OW), lambda n, r: (n, 0, r, 0)),
        compiler_params=pltpu.CompilerParams(
            dimension_semantics=("parallel", "arbitrary")),
        cost_estimate=pl.CostEstimate(
            flops=flops, transcendentals=0, bytes_accessed=bytes_accessed),
    )(x_nchw, w_flat, b_vec)
    return out


if __name__ == "__main__":
    import math

    input_channels = 3
    output_channels = 6
    kernel_size = 2

    # Small, module-consistent shapes: batch=2, C=3, spatial=16x16.
    N, H, W = 2, 16, 16

    key = jax.random.PRNGKey(0)
    kx, kwt, kb = jax.random.split(key, 3)

    x = jax.random.normal(kx, (N, input_channels, H, W), dtype=jnp.float32)

    # Deterministic init mimicking PyTorch Conv2d default (+/- 1/sqrt(fan_in)).
    fan_in = input_channels * kernel_size * kernel_size
    bound = 1.0 / math.sqrt(fan_in)
    weight = jax.random.uniform(
        kwt, (output_channels, input_channels, kernel_size, kernel_size),
        minval=-bound, maxval=bound, dtype=jnp.float32)
    bias = jax.random.uniform(
        kb, (output_channels,), minval=-bound, maxval=bound, dtype=jnp.float32)

    out = conv2d_pallas(x, weight, bias)
    out = jax.block_until_ready(out)

    # Reference check against XLA's conv (NCHW, OIHW).
    ref = jax.lax.conv_general_dilated(
        x, weight, window_strides=(1, 1), padding="VALID",
        dimension_numbers=("NCHW", "OIHW", "NCHW"))
    ref = ref + bias.reshape(1, output_channels, 1, 1)

    assert out.shape == (N, output_channels,
                         H - kernel_size + 1, W - kernel_size + 1)
    assert jnp.allclose(out, ref, atol=1e-3, rtol=1e-3), \
        float(jnp.max(jnp.abs(out - ref)))

    print("KERNEL_OK")
</pallas_src>

<mosaic_0001>
module attributes {stable_mosaic.version = 11 : i64} {
  func.func @_conv_kernel(%arg0: i32, %arg1: i32, %arg2: memref<1x3x16x16xf32, #tpu.memory_space<vmem>>, %arg3: memref<72xf32, #tpu.memory_space<smem>>, %arg4: memref<6xf32, #tpu.memory_space<smem>>, %arg5: memref<1x6x8x15xf32, #tpu.memory_space<vmem>>) attributes {dimension_semantics = [#tpu.dimension_semantics<parallel>, #tpu.dimension_semantics<arbitrary>], iteration_bounds = array<i64: 2, 2>, scalar_prefetch = 0 : i64, scratch_operands = 0 : i64, tpu.core_type = #tpu.core_type<tc>, window_params = [{transform_indices = @transform_0, window_bounds = array<i64: 1, 3, 16, 16>}, {transform_indices = @transform_1, window_bounds = array<i64: 72>}, {transform_indices = @transform_2, window_bounds = array<i64: 6>}, {transform_indices = @transform_3, window_bounds = array<i64: 1, 6, 8, 15>}]} {
    %c1_i32 = arith.constant 1 : i32
    %0 = arith.cmpi slt, %arg1, %c1_i32 : i32
    %1 = arith.extui %0 : i1 to i32
    %c0_i32 = arith.constant 0 : i32
    %2 = arith.cmpi ne, %1, %c0_i32 : i32
    scf.if %2 {
      %c8_i32 = arith.constant 8 : i32
      %6 = arith.muli %arg1, %c8_i32 : i32
      %7 = tpu.assume_multiple %6, 8 : i32
      %c0_i32_2 = arith.constant 0 : i32
      %c8_i32_3 = arith.constant 8 : i32
      %8 = arith.muli %c0_i32_2, %c8_i32_3 : i32
      %9 = tpu.assume_multiple %8, 8 : i32
      %10 = arith.addi %7, %9 : i32
      %c0 = arith.constant 0 : index
      %11 = memref.load %arg4[%c0] : memref<6xf32, #tpu.memory_space<smem>>
      %12 = vector.broadcast %11 : f32 to vector<8x15xf32>
      %c1 = arith.constant 1 : index
      %13 = memref.load %arg4[%c1] : memref<6xf32, #tpu.memory_space<smem>>
      %14 = vector.broadcast %13 : f32 to vector<8x15xf32>
      %c2 = arith.constant 2 : index
      %15 = memref.load %arg4[%c2] : memref<6xf32, #tpu.memory_space<smem>>
      %16 = vector.broadcast %15 : f32 to vector<8x15xf32>
      %c3 = arith.constant 3 : index
      %17 = memref.load %arg4[%c3] : memref<6xf32, #tpu.memory_space<smem>>
      %18 = vector.broadcast %17 : f32 to vector<8x15xf32>
      %c4 = arith.constant 4 : index
      %19 = memref.load %arg4[%c4] : memref<6xf32, #tpu.memory_space<smem>>
      %20 = vector.broadcast %19 : f32 to vector<8x15xf32>
      %c5 = arith.constant 5 : index
      %21 = memref.load %arg4[%c5] : memref<6xf32, #tpu.memory_space<smem>>
      %22 = vector.broadcast %21 : f32 to vector<8x15xf32>
      %c0_i32_4 = arith.constant 0 : i32
      %23 = arith.addi %10, %c0_i32_4 : i32
      %c0_5 = arith.constant 0 : index
      %c0_6 = arith.constant 0 : index
      %24 = arith.index_cast %23 : i32 to index
      %c0_7 = arith.constant 0 : index
      %25 = vector.load %arg2[%c0_5, %c0_6, %24, %c0_7] : memref<1x3x16x16xf32, #tpu.memory_space<vmem>>, vector<1x1x8x15xf32>
      %26 = vector.shape_cast %25 : vector<1x1x8x15xf32> to vector<8x15xf32>
      %c0_8 = arith.constant 0 : index
      %27 = memref.load %arg3[%c0_8] : memref<72xf32, #tpu.memory_space<smem>>
      %28 = vector.broadcast %27 : f32 to vector<8x15xf32>
      %29 = arith.mulf %28, %26 : vector<8x15xf32>
      %30 = arith.addf %12, %29 : vector<8x15xf32>
      %c12 = arith.constant 12 : index
      %31 = memref.load %arg3[%c12] : memref<72xf32, #tpu.memory_space<smem>>
      %32 = vector.broadcast %31 : f32 to vector<8x15xf32>
      %33 = arith.mulf %32, %26 : vector<8x15xf32>
      %34 = arith.addf %14, %33 : vector<8x15xf32>
      %c24 = arith.constant 24 : index
      %35 = memref.load %arg3[%c24] : memref<72xf32, #tpu.memory_space<smem>>
      %36 = vector.broadcast %35 : f32 to vector<8x15xf32>
      %37 = arith.mulf %36, %26 : vector<8x15xf32>
      %38 = arith.addf %16, %37 : vector<8x15xf32>
      %c36 = arith.constant 36 : index
      %39 = memref.load %arg3[%c36] : memref<72xf32, #tpu.memory_space<smem>>
      %40 = vector.broadcast %39 : f32 to vector<8x15xf32>
      %41 = arith.mulf %40, %26 : vector<8x15xf32>
      %42 = arith.addf %18, %41 : vector<8x15xf32>
      %c48 = arith.constant 48 : index
      %43 = memref.load %arg3[%c48] : memref<72xf32, #tpu.memory_space<smem>>
      %44 = vector.broadcast %43 : f32 to vector<8x15xf32>
      %45 = arith.mulf %44, %26 : vector<8x15xf32>
      %46 = arith.addf %20, %45 : vector<8x15xf32>
      %c60 = arith.constant 60 : index
      %47 = memref.load %arg3[%c60] : memref<72xf32, #tpu.memory_space<smem>>
      %48 = vector.broadcast %47 : f32 to vector<8x15xf32>
      %49 = arith.mulf %48, %26 : vector<8x15xf32>
      %50 = arith.addf %22, %49 : vector<8x15xf32>
      %c0_i32_9 = arith.constant 0 : i32
      %51 = arith.addi %10, %c0_i32_9 : i32
      %c0_10 = arith.constant 0 : index
      %c0_11 = arith.constant 0 : index
      %52 = arith.index_cast %51 : i32 to index
      %c1_12 = arith.constant 1 : index
      %53 = vector.load %arg2[%c0_10, %c0_11, %52, %c1_12] : memref<1x3x16x16xf32, #tpu.memory_space<vmem>>, vector<1x1x8x15xf32>
      %54 = vector.shape_cast %53 : vector<1x1x8x15xf32> to vector<8x15xf32>
      %c1_13 = arith.constant 1 : index
      %55 = memref.load %arg3[%c1_13] : memref<72xf32, #tpu.memory_space<smem>>
      %56 = vector.broadcast %55 : f32 to vector<8x15xf32>
      %57 = arith.mulf %56, %54 : vector<8x15xf32>
      %58 = arith.addf %30, %57 : vector<8x15xf32>
      %c13 = arith.constant 13 : index
      %59 = memref.load %arg3[%c13] : memref<72xf32, #tpu.memory_space<smem>>
      %60 = vector.broadcast %59 : f32 to vector<8x15xf32>
      %61 = arith.mulf %60, %54 : vector<8x15xf32>
      %62 = arith.addf %34, %61 : vector<8x15xf32>
      %c25 = arith.constant 25 : index
      %63 = memref.load %arg3[%c25] : memref<72xf32, #tpu.memory_space<smem>>
      %64 = vector.broadcast %63 : f32 to vector<8x15xf32>
      %65 = arith.mulf %64, %54 : vector<8x15xf32>
      %66 = arith.addf %38, %65 : vector<8x15xf32>
      %c37 = arith.constant 37 : index
      %67 = memref.load %arg3[%c37] : memref<72xf32, #tpu.memory_space<smem>>
      %68 = vector.broadcast %67 : f32 to vector<8x15xf32>
      %69 = arith.mulf %68, %54 : vector<8x15xf32>
      %70 = arith.addf %42, %69 : vector<8x15xf32>
      %c49 = arith.constant 49 : index
      %71 = memref.load %arg3[%c49] : memref<72xf32, #tpu.memory_space<smem>>
      %72 = vector.broadcast %71 : f32 to vector<8x15xf32>
      %73 = arith.mulf %72, %54 : vector<8x15xf32>
      %74 = arith.addf %46, %73 : vector<8x15xf32>
      %c61 = arith.constant 61 : index
      %75 = memref.load %arg3[%c61] : memref<72xf32, #tpu.memory_space<smem>>
      %76 = vector.broadcast %75 : f32 to vector<8x15xf32>
      %77 = arith.mulf %76, %54 : vector<8x15xf32>
      %78 = arith.addf %50, %77 : vector<8x15xf32>
      %c1_i32_14 = arith.constant 1 : i32
      %79 = arith.addi %10, %c1_i32_14 : i32
      %c0_15 = arith.constant 0 : index
      %c0_16 = arith.constant 0 : index
      %80 = arith.index_cast %79 : i32 to index
      %c0_17 = arith.constant 0 : index
      %81 = vector.load %arg2[%c0_15, %c0_16, %80, %c0_17] : memref<1x3x16x16xf32, #tpu.memory_space<vmem>>, vector<1x1x8x15xf32>
      %82 = vector.shape_cast %81 : vector<1x1x8x15xf32> to vector<8x15xf32>
      %c2_18 = arith.constant 2 : index
      %83 = memref.load %arg3[%c2_18] : memref<72xf32, #tpu.memory_space<smem>>
      %84 = vector.broadcast %83 : f32 to vector<8x15xf32>
      %85 = arith.mulf %84, %82 : vector<8x15xf32>
      %86 = arith.addf %58, %85 : vector<8x15xf32>
      %c14 = arith.constant 14 : index
      %87 = memref.load %arg3[%c14] : memref<72xf32, #tpu.memory_space<smem>>
      %88 = vector.broadcast %87 : f32 to vector<8x15xf32>
      %89 = arith.mulf %88, %82 : vector<8x15xf32>
      %90 = arith.addf %62, %89 : vector<8x15xf32>
      %c26 = arith.constant 26 : index
      %91 = memref.load %arg3[%c26] : memref<72xf32, #tpu.memory_space<smem>>
      %92 = vector.broadcast %91 : f32 to vector<8x15xf32>
      %93 = arith.mulf %92, %82 : vector<8x15xf32>
      %94 = arith.addf %66, %93 : vector<8x15xf32>
      %c38 = arith.constant 38 : index
      %95 = memref.load %arg3[%c38] : memref<72xf32, #tpu.memory_space<smem>>
      %96 = vector.broadcast %95 : f32 to vector<8x15xf32>
      %97 = arith.mulf %96, %82 : vector<8x15xf32>
      %98 = arith.addf %70, %97 : vector<8x15xf32>
      %c50 = arith.constant 50 : index
      %99 = memref.load %arg3[%c50] : memref<72xf32, #tpu.memory_space<smem>>
      %100 = vector.broadcast %99 : f32 to vector<8x15xf32>
      %101 = arith.mulf %100, %82 : vector<8x15xf32>
      %102 = arith.addf %74, %101 : vector<8x15xf32>
      %c62 = arith.constant 62 : index
      %103 = memref.load %arg3[%c62] : memref<72xf32, #tpu.memory_space<smem>>
      %104 = vector.broadcast %103 : f32 to vector<8x15xf32>
      %105 = arith.mulf %104, %82 : vector<8x15xf32>
      %106 = arith.addf %78, %105 : vector<8x15xf32>
      %c1_i32_19 = arith.constant 1 : i32
      %107 = arith.addi %10, %c1_i32_19 : i32
      %c0_20 = arith.constant 0 : index
      %c0_21 = arith.constant 0 : index
      %108 = arith.index_cast %107 : i32 to index
      %c1_22 = arith.constant 1 : index
      %109 = vector.load %arg2[%c0_20, %c0_21, %108, %c1_22] : memref<1x3x16x16xf32, #tpu.memory_space<vmem>>, vector<1x1x8x15xf32>
      %110 = vector.shape_cast %109 : vector<1x1x8x15xf32> to vector<8x15xf32>
      %c3_23 = arith.constant 3 : index
      %111 = memref.load %arg3[%c3_23] : memref<72xf32, #tpu.memory_space<smem>>
      %112 = vector.broadcast %111 : f32 to vector<8x15xf32>
      %113 = arith.mulf %112, %110 : vector<8x15xf32>
      %114 = arith.addf %86, %113 : vector<8x15xf32>
      %c15 = arith.constant 15 : index
      %115 = memref.load %arg3[%c15] : memref<72xf32, #tpu.memory_space<smem>>
      %116 = vector.broadcast %115 : f32 to vector<8x15xf32>
      %117 = arith.mulf %116, %110 : vector<8x15xf32>
      %118 = arith.addf %90, %117 : vector<8x15xf32>
      %c27 = arith.constant 27 : index
      %119 = memref.load %arg3[%c27] : memref<72xf32, #tpu.memory_space<smem>>
      %120 = vector.broadcast %119 : f32 to vector<8x15xf32>
      %121 = arith.mulf %120, %110 : vector<8x15xf32>
      %122 = arith.addf %94, %121 : vector<8x15xf32>
      %c39 = arith.constant 39 : index
      %123 = memref.load %arg3[%c39] : memref<72xf32, #tpu.memory_space<smem>>
      %124 = vector.broadcast %123 : f32 to vector<8x15xf32>
      %125 = arith.mulf %124, %110 : vector<8x15xf32>
      %126 = arith.addf %98, %125 : vector<8x15xf32>
      %c51 = arith.constant 51 : index
      %127 = memref.load %arg3[%c51] : memref<72xf32, #tpu.memory_space<smem>>
      %128 = vector.broadcast %127 : f32 to vector<8x15xf32>
      %129 = arith.mulf %128, %110 : vector<8x15xf32>
      %130 = arith.addf %102, %129 : vector<8x15xf32>
      %c63 = arith.constant 63 : index
      %131 = memref.load %arg3[%c63] : memref<72xf32, #tpu.memory_space<smem>>
      %132 = vector.broadcast %131 : f32 to vector<8x15xf32>
      %133 = arith.mulf %132, %110 : vector<8x15xf32>
      %134 = arith.addf %106, %133 : vector<8x15xf32>
      %c0_i32_24 = arith.constant 0 : i32
      %135 = arith.addi %10, %c0_i32_24 : i32
      %c0_25 = arith.constant 0 : index
      %c1_26 = arith.constant 1 : index
      %136 = arith.index_cast %135 : i32 to index
      %c0_27 = arith.constant 0 : index
      %137 = vector.load %arg2[%c0_25, %c1_26, %136, %c0_27] : memref<1x3x16x16xf32, #tpu.memory_space<vmem>>, vector<1x1x8x15xf32>
      %138 = vector.shape_cast %137 : vector<1x1x8x15xf32> to vector<8x15xf32>
      %c4_28 = arith.constant 4 : index
      %139 = memref.load %arg3[%c4_28] : memref<72xf32, #tpu.memory_space<smem>>
      %140 = vector.broadcast %139 : f32 to vector<8x15xf32>
      %141 = arith.mulf %140, %138 : vector<8x15xf32>
      %142 = arith.addf %114, %141 : vector<8x15xf32>
      %c16 = arith.constant 16 : index
      %143 = memref.load %arg3[%c16] : memref<72xf32, #tpu.memory_space<smem>>
      %144 = vector.broadcast %143 : f32 to vector<8x15xf32>
      %145 = arith.mulf %144, %138 : vector<8x15xf32>
      %146 = arith.addf %118, %145 : vector<8x15xf32>
      %c28 = arith.constant 28 : index
      %147 = memref.load %arg3[%c28] : memref<72xf32, #tpu.memory_space<smem>>
      %148 = vector.broadcast %147 : f32 to vector<8x15xf32>
      %149 = arith.mulf %148, %138 : vector<8x15xf32>
      %150 = arith.addf %122, %149 : vector<8x15xf32>
      %c40 = arith.constant 40 : index
      %151 = memref.load %arg3[%c40] : memref<72xf32, #tpu.memory_space<smem>>
      %152 = vector.broadcast %151 : f32 to vector<8x15xf32>
      %153 = arith.mulf %152, %138 : vector<8x15xf32>
      %154 = arith.addf %126, %153 : vector<8x15xf32>
      %c52 = arith.constant 52 : index
      %155 = memref.load %arg3[%c52] : memref<72xf32, #tpu.memory_space<smem>>
      %156 = vector.broadcast %155 : f32 to vector<8x15xf32>
      %157 = arith.mulf %156, %138 : vector<8x15xf32>
      %158 = arith.addf %130, %157 : vector<8x15xf32>
      %c64 = arith.constant 64 : index
      %159 = memref.load %arg3[%c64] : memref<72xf32, #tpu.memory_space<smem>>
      %160 = vector.broadcast %159 : f32 to vector<8x15xf32>
      %161 = arith.mulf %160, %138 : vector<8x15xf32>
      %162 = arith.addf %134, %161 : vector<8x15xf32>
      %c0_i32_29 = arith.constant 0 : i32
      %163 = arith.addi %10, %c0_i32_29 : i32
      %c0_30 = arith.constant 0 : index
      %c1_31 = arith.constant 1 : index
      %164 = arith.index_cast %163 : i32 to index
      %c1_32 = arith.constant 1 : index
      %165 = vector.load %arg2[%c0_30, %c1_31, %164, %c1_32] : memref<1x3x16x16xf32, #tpu.memory_space<vmem>>, vector<1x1x8x15xf32>
      %166 = vector.shape_cast %165 : vector<1x1x8x15xf32> to vector<8x15xf32>
      %c5_33 = arith.constant 5 : index
      %167 = memref.load %arg3[%c5_33] : memref<72xf32, #tpu.memory_space<smem>>
      %168 = vector.broadcast %167 : f32 to vector<8x15xf32>
      %169 = arith.mulf %168, %166 : vector<8x15xf32>
      %170 = arith.addf %142, %169 : vector<8x15xf32>
      %c17 = arith.constant 17 : index
      %171 = memref.load %arg3[%c17] : memref<72xf32, #tpu.memory_space<smem>>
      %172 = vector.broadcast %171 : f32 to vector<8x15xf32>
      %173 = arith.mulf %172, %166 : vector<8x15xf32>
      %174 = arith.addf %146, %173 : vector<8x15xf32>
      %c29 = arith.constant 29 : index
      %175 = memref.load %arg3[%c29] : memref<72xf32, #tpu.memory_space<smem>>
      %176 = vector.broadcast %175 : f32 to vector<8x15xf32>
      %177 = arith.mulf %176, %166 : vector<8x15xf32>
      %178 = arith.addf %150, %177 : vector<8x15xf32>
      %c41 = arith.constant 41 : index
      %179 = memref.load %arg3[%c41] : memref<72xf32, #tpu.memory_space<smem>>
      %180 = vector.broadcast %179 : f32 to vector<8x15xf32>
      %181 = arith.mulf %180, %166 : vector<8x15xf32>
      %182 = arith.addf %154, %181 : vector<8x15xf32>
      %c53 = arith.constant 53 : index
      %183 = memref.load %arg3[%c53] : memref<72xf32, #tpu.memory_space<smem>>
      %184 = vector.broadcast %183 : f32 to vector<8x15xf32>
      %185 = arith.mulf %184, %166 : vector<8x15xf32>
      %186 = arith.addf %158, %185 : vector<8x15xf32>
      %c65 = arith.constant 65 : index
      %187 = memref.load %arg3[%c65] : memref<72xf32, #tpu.memory_space<smem>>
      %188 = vector.broadcast %187 : f32 to vector<8x15xf32>
      %189 = arith.mulf %188, %166 : vector<8x15xf32>
      %190 = arith.addf %162, %189 : vector<8x15xf32>
      %c1_i32_34 = arith.constant 1 : i32
      %191 = arith.addi %10, %c1_i32_34 : i32
      %c0_35 = arith.constant 0 : index
      %c1_36 = arith.constant 1 : index
      %192 = arith.index_cast %191 : i32 to index
      %c0_37 = arith.constant 0 : index
      %193 = vector.load %arg2[%c0_35, %c1_36, %192, %c0_37] : memref<1x3x16x16xf32, #tpu.memory_space<vmem>>, vector<1x1x8x15xf32>
      %194 = vector.shape_cast %193 : vector<1x1x8x15xf32> to vector<8x15xf32>
      %c6 = arith.constant 6 : index
      %195 = memref.load %arg3[%c6] : memref<72xf32, #tpu.memory_space<smem>>
      %196 = vector.broadcast %195 : f32 to vector<8x15xf32>
      %197 = arith.mulf %196, %194 : vector<8x15xf32>
      %198 = arith.addf %170, %197 : vector<8x15xf32>
      %c18 = arith.constant 18 : index
      %199 = memref.load %arg3[%c18] : memref<72xf32, #tpu.memory_space<smem>>
      %200 = vector.broadcast %199 : f32 to vector<8x15xf32>
      %201 = arith.mulf %200, %194 : vector<8x15xf32>
      %202 = arith.addf %174, %201 : vector<8x15xf32>
      %c30 = arith.constant 30 : index
      %203 = memref.load %arg3[%c30] : memref<72xf32, #tpu.memory_space<smem>>
      %204 = vector.broadcast %203 : f32 to vector<8x15xf32>
      %205 = arith.mulf %204, %194 : vector<8x15xf32>
      %206 = arith.addf %178, %205 : vector<8x15xf32>
      %c42 = arith.constant 42 : index
      %207 = memref.load %arg3[%c42] : memref<72xf32, #tpu.memory_space<smem>>
      %208 = vector.broadcast %207 : f32 to vector<8x15xf32>
      %209 = arith.mulf %208, %194 : vector<8x15xf32>
      %210 = arith.addf %182, %209 : vector<8x15xf32>
      %c54 = arith.constant 54 : index
      %211 = memref.load %arg3[%c54] : memref<72xf32, #tpu.memory_space<smem>>
      %212 = vector.broadcast %211 : f32 to vector<8x15xf32>
      %213 = arith.mulf %212, %194 : vector<8x15xf32>
      %214 = arith.addf %186, %213 : vector<8x15xf32>
      %c66 = arith.constant 66 : index
      %215 = memref.load %arg3[%c66] : memref<72xf32, #tpu.memory_space<smem>>
      %216 = vector.broadcast %215 : f32 to vector<8x15xf32>
      %217 = arith.mulf %216, %194 : vector<8x15xf32>
      %218 = arith.addf %190, %217 : vector<8x15xf32>
      %c1_i32_38 = arith.constant 1 : i32
      %219 = arith.addi %10, %c1_i32_38 : i32
      %c0_39 = arith.constant 0 : index
      %c1_40 = arith.constant 1 : index
      %220 = arith.index_cast %219 : i32 to index
      %c1_41 = arith.constant 1 : index
      %221 = vector.load %arg2[%c0_39, %c1_40, %220, %c1_41] : memref<1x3x16x16xf32, #tpu.memory_space<vmem>>, vector<1x1x8x15xf32>
      %222 = vector.shape_cast %221 : vector<1x1x8x15xf32> to vector<8x15xf32>
      %c7 = arith.constant 7 : index
      %223 = memref.load %arg3[%c7] : memref<72xf32, #tpu.memory_space<smem>>
      %224 = vector.broadcast %223 : f32 to vector<8x15xf32>
      %225 = arith.mulf %224, %222 : vector<8x15xf32>
      %226 = arith.addf %198, %225 : vector<8x15xf32>
      %c19 = arith.constant 19 : index
      %227 = memref.load %arg3[%c19] : memref<72xf32, #tpu.memory_space<smem>>
      %228 = vector.broadcast %227 : f32 to vector<8x15xf32>
      %229 = arith.mulf %228, %222 : vector<8x15xf32>
      %230 = arith.addf %202, %229 : vector<8x15xf32>
      %c31 = arith.constant 31 : index
      %231 = memref.load %arg3[%c31] : memref<72xf32, #tpu.memory_space<smem>>
      %232 = vector.broadcast %231 : f32 to vector<8x15xf32>
      %233 = arith.mulf %232, %222 : vector<8x15xf32>
      %234 = arith.addf %206, %233 : vector<8x15xf32>
      %c43 = arith.constant 43 : index
      %235 = memref.load %arg3[%c43] : memref<72xf32, #tpu.memory_space<smem>>
      %236 = vector.broadcast %235 : f32 to vector<8x15xf32>
      %237 = arith.mulf %236, %222 : vector<8x15xf32>
      %238 = arith.addf %210, %237 : vector<8x15xf32>
      %c55 = arith.constant 55 : index
      %239 = memref.load %arg3[%c55] : memref<72xf32, #tpu.memory_space<smem>>
      %240 = vector.broadcast %239 : f32 to vector<8x15xf32>
      %241 = arith.mulf %240, %222 : vector<8x15xf32>
      %242 = arith.addf %214, %241 : vector<8x15xf32>
      %c67 = arith.constant 67 : index
      %243 = memref.load %arg3[%c67] : memref<72xf32, #tpu.memory_space<smem>>
      %244 = vector.broadcast %243 : f32 to vector<8x15xf32>
      %245 = arith.mulf %244, %222 : vector<8x15xf32>
      %246 = arith.addf %218, %245 : vector<8x15xf32>
      %c0_i32_42 = arith.constant 0 : i32
      %247 = arith.addi %10, %c0_i32_42 : i32
      %c0_43 = arith.constant 0 : index
      %c2_44 = arith.constant 2 : index
      %248 = arith.index_cast %247 : i32 to index
      %c0_45 = arith.constant 0 : index
      %249 = vector.load %arg2[%c0_43, %c2_44, %248, %c0_45] : memref<1x3x16x16xf32, #tpu.memory_space<vmem>>, vector<1x1x8x15xf32>
      %250 = vector.shape_cast %249 : vector<1x1x8x15xf32> to vector<8x15xf32>
      %c8 = arith.constant 8 : index
      %251 = memref.load %arg3[%c8] : memref<72xf32, #tpu.memory_space<smem>>
      %252 = vector.broadcast %251 : f32 to vector<8x15xf32>
      %253 = arith.mulf %252, %250 : vector<8x15xf32>
      %254 = arith.addf %226, %253 : vector<8x15xf32>
      %c20 = arith.constant 20 : index
      %255 = memref.load %arg3[%c20] : memref<72xf32, #tpu.memory_space<smem>>
      %256 = vector.broadcast %255 : f32 to vector<8x15xf32>
      %257 = arith.mulf %256, %250 : vector<8x15xf32>
      %258 = arith.addf %230, %257 : vector<8x15xf32>
      %c32 = arith.constant 32 : index
      %259 = memref.load %arg3[%c32] : memref<72xf32, #tpu.memory_space<smem>>
      %260 = vector.broadcast %259 : f32 to vector<8x15xf32>
      %261 = arith.mulf %260, %250 : vector<8x15xf32>
      %262 = arith.addf %234, %261 : vector<8x15xf32>
      %c44 = arith.constant 44 : index
      %263 = memref.load %arg3[%c44] : memref<72xf32, #tpu.memory_space<smem>>
      %264 = vector.broadcast %263 : f32 to vector<8x15xf32>
      %265 = arith.mulf %264, %250 : vector<8x15xf32>
      %266 = arith.addf %238, %265 : vector<8x15xf32>
      %c56 = arith.constant 56 : index
      %267 = memref.load %arg3[%c56] : memref<72xf32, #tpu.memory_space<smem>>
      %268 = vector.broadcast %267 : f32 to vector<8x15xf32>
      %269 = arith.mulf %268, %250 : vector<8x15xf32>
      %270 = arith.addf %242, %269 : vector<8x15xf32>
      %c68 = arith.constant 68 : index
      %271 = memref.load %arg3[%c68] : memref<72xf32, #tpu.memory_space<smem>>
      %272 = vector.broadcast %271 : f32 to vector<8x15xf32>
      %273 = arith.mulf %272, %250 : vector<8x15xf32>
      %274 = arith.addf %246, %273 : vector<8x15xf32>
      %c0_i32_46 = arith.constant 0 : i32
      %275 = arith.addi %10, %c0_i32_46 : i32
      %c0_47 = arith.constant 0 : index
      %c2_48 = arith.constant 2 : index
      %276 = arith.index_cast %275 : i32 to index
      %c1_49 = arith.constant 1 : index
      %277 = vector.load %arg2[%c0_47, %c2_48, %276, %c1_49] : memref<1x3x16x16xf32, #tpu.memory_space<vmem>>, vector<1x1x8x15xf32>
      %278 = vector.shape_cast %277 : vector<1x1x8x15xf32> to vector<8x15xf32>
      %c9 = arith.constant 9 : index
      %279 = memref.load %arg3[%c9] : memref<72xf32, #tpu.memory_space<smem>>
      %280 = vector.broadcast %279 : f32 to vector<8x15xf32>
      %281 = arith.mulf %280, %278 : vector<8x15xf32>
      %282 = arith.addf %254, %281 : vector<8x15xf32>
      %c21 = arith.constant 21 : index
      %283 = memref.load %arg3[%c21] : memref<72xf32, #tpu.memory_space<smem>>
      %284 = vector.broadcast %283 : f32 to vector<8x15xf32>
      %285 = arith.mulf %284, %278 : vector<8x15xf32>
      %286 = arith.addf %258, %285 : vector<8x15xf32>
      %c33 = arith.constant 33 : index
      %287 = memref.load %arg3[%c33] : memref<72xf32, #tpu.memory_space<smem>>
      %288 = vector.broadcast %287 : f32 to vector<8x15xf32>
      %289 = arith.mulf %288, %278 : vector<8x15xf32>
      %290 = arith.addf %262, %289 : vector<8x15xf32>
      %c45 = arith.constant 45 : index
      %291 = memref.load %arg3[%c45] : memref<72xf32, #tpu.memory_space<smem>>
      %292 = vector.broadcast %291 : f32 to vector<8x15xf32>
      %293 = arith.mulf %292, %278 : vector<8x15xf32>
      %294 = arith.addf %266, %293 : vector<8x15xf32>
      %c57 = arith.constant 57 : index
      %295 = memref.load %arg3[%c57] : memref<72xf32, #tpu.memory_space<smem>>
      %296 = vector.broadcast %295 : f32 to vector<8x15xf32>
      %297 = arith.mulf %296, %278 : vector<8x15xf32>
      %298 = arith.addf %270, %297 : vector<8x15xf32>
      %c69 = arith.constant 69 : index
      %299 = memref.load %arg3[%c69] : memref<72xf32, #tpu.memory_space<smem>>
      %300 = vector.broadcast %299 : f32 to vector<8x15xf32>
      %301 = arith.mulf %300, %278 : vector<8x15xf32>
      %302 = arith.addf %274, %301 : vector<8x15xf32>
      %c1_i32_50 = arith.constant 1 : i32
      %303 = arith.addi %10, %c1_i32_50 : i32
      %c0_51 = arith.constant 0 : index
      %c2_52 = arith.constant 2 : index
      %304 = arith.index_cast %303 : i32 to index
      %c0_53 = arith.constant 0 : index
      %305 = vector.load %arg2[%c0_51, %c2_52, %304, %c0_53] : memref<1x3x16x16xf32, #tpu.memory_space<vmem>>, vector<1x1x8x15xf32>
      %306 = vector.shape_cast %305 : vector<1x1x8x15xf32> to vector<8x15xf32>
      %c10 = arith.constant 10 : index
      %307 = memref.load %arg3[%c10] : memref<72xf32, #tpu.memory_space<smem>>
      %308 = vector.broadcast %307 : f32 to vector<8x15xf32>
      %309 = arith.mulf %308, %306 : vector<8x15xf32>
      %310 = arith.addf %282, %309 : vector<8x15xf32>
      %c22 = arith.constant 22 : index
      %311 = memref.load %arg3[%c22] : memref<72xf32, #tpu.memory_space<smem>>
      %312 = vector.broadcast %311 : f32 to vector<8x15xf32>
      %313 = arith.mulf %312, %306 : vector<8x15xf32>
      %314 = arith.addf %286, %313 : vector<8x15xf32>
      %c34 = arith.constant 34 : index
      %315 = memref.load %arg3[%c34] : memref<72xf32, #tpu.memory_space<smem>>
      %316 = vector.broadcast %315 : f32 to vector<8x15xf32>
      %317 = arith.mulf %316, %306 : vector<8x15xf32>
      %318 = arith.addf %290, %317 : vector<8x15xf32>
      %c46 = arith.constant 46 : index
      %319 = memref.load %arg3[%c46] : memref<72xf32, #tpu.memory_space<smem>>
      %320 = vector.broadcast %319 : f32 to vector<8x15xf32>
      %321 = arith.mulf %320, %306 : vector<8x15xf32>
      %322 = arith.addf %294, %321 : vector<8x15xf32>
      %c58 = arith.constant 58 : index
      %323 = memref.load %arg3[%c58] : memref<72xf32, #tpu.memory_space<smem>>
      %324 = vector.broadcast %323 : f32 to vector<8x15xf32>
      %325 = arith.mulf %324, %306 : vector<8x15xf32>
      %326 = arith.addf %298, %325 : vector<8x15xf32>
      %c70 = arith.constant 70 : index
      %327 = memref.load %arg3[%c70] : memref<72xf32, #tpu.memory_space<smem>>
      %328 = vector.broadcast %327 : f32 to vector<8x15xf32>
      %329 = arith.mulf %328, %306 : vector<8x15xf32>
      %330 = arith.addf %302, %329 : vector<8x15xf32>
      %c1_i32_54 = arith.constant 1 : i32
      %331 = arith.addi %10, %c1_i32_54 : i32
      %c0_55 = arith.constant 0 : index
      %c2_56 = arith.constant 2 : index
      %332 = arith.index_cast %331 : i32 to index
      %c1_57 = arith.constant 1 : index
      %333 = vector.load %arg2[%c0_55, %c2_56, %332, %c1_57] : memref<1x3x16x16xf32, #tpu.memory_space<vmem>>, vector<1x1x8x15xf32>
      %334 = vector.shape_cast %333 : vector<1x1x8x15xf32> to vector<8x15xf32>
      %c11 = arith.constant 11 : index
      %335 = memref.load %arg3[%c11] : memref<72xf32, #tpu.memory_space<smem>>
      %336 = vector.broadcast %335 : f32 to vector<8x15xf32>
      %337 = arith.mulf %336, %334 : vector<8x15xf32>
      %338 = arith.addf %310, %337 : vector<8x15xf32>
      %c23 = arith.constant 23 : index
      %339 = memref.load %arg3[%c23] : memref<72xf32, #tpu.memory_space<smem>>
      %340 = vector.broadcast %339 : f32 to vector<8x15xf32>
      %341 = arith.mulf %340, %334 : vector<8x15xf32>
      %342 = arith.addf %314, %341 : vector<8x15xf32>
      %c35 = arith.constant 35 : index
      %343 = memref.load %arg3[%c35] : memref<72xf32, #tpu.memory_space<smem>>
      %344 = vector.broadcast %343 : f32 to vector<8x15xf32>
      %345 = arith.mulf %344, %334 : vector<8x15xf32>
      %346 = arith.addf %318, %345 : vector<8x15xf32>
      %c47 = arith.constant 47 : index
      %347 = memref.load %arg3[%c47] : memref<72xf32, #tpu.memory_space<smem>>
      %348 = vector.broadcast %347 : f32 to vector<8x15xf32>
      %349 = arith.mulf %348, %334 : vector<8x15xf32>
      %350 = arith.addf %322, %349 : vector<8x15xf32>
      %c59 = arith.constant 59 : index
      %351 = memref.load %arg3[%c59] : memref<72xf32, #tpu.memory_space<smem>>
      %352 = vector.broadcast %351 : f32 to vector<8x15xf32>
      %353 = arith.mulf %352, %334 : vector<8x15xf32>
      %354 = arith.addf %326, %353 : vector<8x15xf32>
      %c71 = arith.constant 71 : index
      %355 = memref.load %arg3[%c71] : memref<72xf32, #tpu.memory_space<smem>>
      %356 = vector.broadcast %355 : f32 to vector<8x15xf32>
      %357 = arith.mulf %356, %334 : vector<8x15xf32>
      %358 = arith.addf %330, %357 : vector<8x15xf32>
      %c0_58 = arith.constant 0 : index
      %c0_59 = arith.constant 0 : index
      %359 = arith.index_cast %9 : i32 to index
      %c0_60 = arith.constant 0 : index
      %360 = vector.load %arg5[%c0_58, %c0_59, %359, %c0_60] : memref<1x6x8x15xf32, #tpu.memory_space<vmem>>, vector<1x1x8x15xf32>
      %361 = vector.shape_cast %360 : vector<1x1x8x15xf32> to vector<8x15xf32>
      %362 = vector.shape_cast %338 : vector<8x15xf32> to vector<1x1x8x15xf32>
      tpu.vector_store %arg5[%c0_58, %c0_59, %359, %c0_60], %362 {strides = array<i32>} : memref<1x6x8x15xf32, #tpu.memory_space<vmem>>, vector<1x1x8x15xf32>,
      %c0_61 = arith.constant 0 : index
      %c1_62 = arith.constant 1 : index
      %363 = arith.index_cast %9 : i32 to index
      %c0_63 = arith.constant 0 : index
      %364 = vector.load %arg5[%c0_61, %c1_62, %363, %c0_63] : memref<1x6x8x15xf32, #tpu.memory_space<vmem>>, vector<1x1x8x15xf32>
      %365 = vector.shape_cast %364 : vector<1x1x8x15xf32> to vector<8x15xf32>
      %366 = vector.shape_cast %342 : vector<8x15xf32> to vector<1x1x8x15xf32>
      tpu.vector_store %arg5[%c0_61, %c1_62, %363, %c0_63], %366 {strides = array<i32>} : memref<1x6x8x15xf32, #tpu.memory_space<vmem>>, vector<1x1x8x15xf32>,
      %c0_64 = arith.constant 0 : index
      %c2_65 = arith.constant 2 : index
      %367 = arith.index_cast %9 : i32 to index
      %c0_66 = arith.constant 0 : index
      %368 = vector.load %arg5[%c0_64, %c2_65, %367, %c0_66] : memref<1x6x8x15xf32, #tpu.memory_space<vmem>>, vector<1x1x8x15xf32>
      %369 = vector.shape_cast %368 : vector<1x1x8x15xf32> to vector<8x15xf32>
      %370 = vector.shape_cast %346 : vector<8x15xf32> to vector<1x1x8x15xf32>
      tpu.vector_store %arg5[%c0_64, %c2_65, %367, %c0_66], %370 {strides = array<i32>} : memref<1x6x8x15xf32, #tpu.memory_space<vmem>>, vector<1x1x8x15xf32>,
      %c0_67 = arith.constant 0 : index
      %c3_68 = arith.constant 3 : index
      %371 = arith.index_cast %9 : i32 to index
      %c0_69 = arith.constant 0 : index
      %372 = vector.load %arg5[%c0_67, %c3_68, %371, %c0_69] : memref<1x6x8x15xf32, #tpu.memory_space<vmem>>, vector<1x1x8x15xf32>
      %373 = vector.shape_cast %372 : vector<1x1x8x15xf32> to vector<8x15xf32>
      %374 = vector.shape_cast %350 : vector<8x15xf32> to vector<1x1x8x15xf32>
      tpu.vector_store %arg5[%c0_67, %c3_68, %371, %c0_69], %374 {strides = array<i32>} : memref<1x6x8x15xf32, #tpu.memory_space<vmem>>, vector<1x1x8x15xf32>,
      %c0_70 = arith.constant 0 : index
      %c4_71 = arith.constant 4 : index
      %375 = arith.index_cast %9 : i32 to index
      %c0_72 = arith.constant 0 : index
      %376 = vector.load %arg5[%c0_70, %c4_71, %375, %c0_72] : memref<1x6x8x15xf32, #tpu.memory_space<vmem>>, vector<1x1x8x15xf32>
      %377 = vector.shape_cast %376 : vector<1x1x8x15xf32> to vector<8x15xf32>
      %378 = vector.shape_cast %354 : vector<8x15xf32> to vector<1x1x8x15xf32>
      tpu.vector_store %arg5[%c0_70, %c4_71, %375, %c0_72], %378 {strides = array<i32>} : memref<1x6x8x15xf32, #tpu.memory_space<vmem>>, vector<1x1x8x15xf32>,
      %c0_73 = arith.constant 0 : index
      %c5_74 = arith.constant 5 : index
      %379 = arith.index_cast %9 : i32 to index
      %c0_75 = arith.constant 0 : index
      %380 = vector.load %arg5[%c0_73, %c5_74, %379, %c0_75] : memref<1x6x8x15xf32, #tpu.memory_space<vmem>>, vector<1x1x8x15xf32>
      %381 = vector.shape_cast %380 : vector<1x1x8x15xf32> to vector<8x15xf32>
      %382 = vector.shape_cast %358 : vector<8x15xf32> to vector<1x1x8x15xf32>
      tpu.vector_store %arg5[%c0_73, %c5_74, %379, %c0_75], %382 {strides = array<i32>} : memref<1x6x8x15xf32, #tpu.memory_space<vmem>>, vector<1x1x8x15xf32>,
      %c1_i32_76 = arith.constant 1 : i32
    } else {
    }
    %c1_i32_0 = arith.constant 1 : i32
    %3 = arith.cmpi eq, %arg1, %c1_i32_0 : i32
    %4 = arith.extui %3 : i1 to i32
    %c0_i32_1 = arith.constant 0 : i32
    %5 = arith.cmpi ne, %4, %c0_i32_1 : i32
    scf.if %5 {
      %c0 = arith.constant 0 : index
      %6 = memref.load %arg4[%c0] : memref<6xf32, #tpu.memory_space<smem>>
      %7 = vector.broadcast %6 : f32 to vector<7x15xf32>
      %c1 = arith.constant 1 : index
      %8 = memref.load %arg4[%c1] : memref<6xf32, #tpu.memory_space<smem>>
      %9 = vector.broadcast %8 : f32 to vector<7x15xf32>
      %c2 = arith.constant 2 : index
      %10 = memref.load %arg4[%c2] : memref<6xf32, #tpu.memory_space<smem>>
      %11 = vector.broadcast %10 : f32 to vector<7x15xf32>
      %c3 = arith.constant 3 : index
      %12 = memref.load %arg4[%c3] : memref<6xf32, #tpu.memory_space<smem>>
      %13 = vector.broadcast %12 : f32 to vector<7x15xf32>
      %c4 = arith.constant 4 : index
      %14 = memref.load %arg4[%c4] : memref<6xf32, #tpu.memory_space<smem>>
      %15 = vector.broadcast %14 : f32 to vector<7x15xf32>
      %c5 = arith.constant 5 : index
      %16 = memref.load %arg4[%c5] : memref<6xf32, #tpu.memory_space<smem>>
      %17 = vector.broadcast %16 : f32 to vector<7x15xf32>
      %c0_2 = arith.constant 0 : index
      %c0_3 = arith.constant 0 : index
      %c8 = arith.constant 8 : index
      %c0_4 = arith.constant 0 : index
      %18 = vector.load %arg2[%c0_2, %c0_3, %c8, %c0_4] : memref<1x3x16x16xf32, #tpu.memory_space<vmem>>, vector<1x1x7x15xf32>
      %19 = vector.shape_cast %18 : vector<1x1x7x15xf32> to vector<7x15xf32>
      %c0_5 = arith.constant 0 : index
      %20 = memref.load %arg3[%c0_5] : memref<72xf32, #tpu.memory_space<smem>>
      %21 = vector.broadcast %20 : f32 to vector<7x15xf32>
      %22 = arith.mulf %21, %19 : vector<7x15xf32>
      %23 = arith.addf %7, %22 : vector<7x15xf32>
      %c12 = arith.constant 12 : index
      %24 = memref.load %arg3[%c12] : memref<72xf32, #tpu.memory_space<smem>>
      %25 = vector.broadcast %24 : f32 to vector<7x15xf32>
      %26 = arith.mulf %25, %19 : vector<7x15xf32>
      %27 = arith.addf %9, %26 : vector<7x15xf32>
      %c24 = arith.constant 24 : index
      %28 = memref.load %arg3[%c24] : memref<72xf32, #tpu.memory_space<smem>>
      %29 = vector.broadcast %28 : f32 to vector<7x15xf32>
      %30 = arith.mulf %29, %19 : vector<7x15xf32>
      %31 = arith.addf %11, %30 : vector<7x15xf32>
      %c36 = arith.constant 36 : index
      %32 = memref.load %arg3[%c36] : memref<72xf32, #tpu.memory_space<smem>>
      %33 = vector.broadcast %32 : f32 to vector<7x15xf32>
      %34 = arith.mulf %33, %19 : vector<7x15xf32>
      %35 = arith.addf %13, %34 : vector<7x15xf32>
      %c48 = arith.constant 48 : index
      %36 = memref.load %arg3[%c48] : memref<72xf32, #tpu.memory_space<smem>>
      %37 = vector.broadcast %36 : f32 to vector<7x15xf32>
      %38 = arith.mulf %37, %19 : vector<7x15xf32>
      %39 = arith.addf %15, %38 : vector<7x15xf32>
      %c60 = arith.constant 60 : index
      %40 = memref.load %arg3[%c60] : memref<72xf32, #tpu.memory_space<smem>>
      %41 = vector.broadcast %40 : f32 to vector<7x15xf32>
      %42 = arith.mulf %41, %19 : vector<7x15xf32>
      %43 = arith.addf %17, %42 : vector<7x15xf32>
      %c0_6 = arith.constant 0 : index
      %c0_7 = arith.constant 0 : index
      %c8_8 = arith.constant 8 : index
      %c1_9 = arith.constant 1 : index
      %44 = vector.load %arg2[%c0_6, %c0_7, %c8_8, %c1_9] : memref<1x3x16x16xf32, #tpu.memory_space<vmem>>, vector<1x1x7x15xf32>
      %45 = vector.shape_cast %44 : vector<1x1x7x15xf32> to vector<7x15xf32>
      %c1_10 = arith.constant 1 : index
      %46 = memref.load %arg3[%c1_10] : memref<72xf32, #tpu.memory_space<smem>>
      %47 = vector.broadcast %46 : f32 to vector<7x15xf32>
      %48 = arith.mulf %47, %45 : vector<7x15xf32>
      %49 = arith.addf %23, %48 : vector<7x15xf32>
      %c13 = arith.constant 13 : index
      %50 = memref.load %arg3[%c13] : memref<72xf32, #tpu.memory_space<smem>>
      %51 = vector.broadcast %50 : f32 to vector<7x15xf32>
      %52 = arith.mulf %51, %45 : vector<7x15xf32>
      %53 = arith.addf %27, %52 : vector<7x15xf32>
      %c25 = arith.constant 25 : index
      %54 = memref.load %arg3[%c25] : memref<72xf32, #tpu.memory_space<smem>>
      %55 = vector.broadcast %54 : f32 to vector<7x15xf32>
      %56 = arith.mulf %55, %45 : vector<7x15xf32>
      %57 = arith.addf %31, %56 : vector<7x15xf32>
      %c37 = arith.constant 37 : index
      %58 = memref.load %arg3[%c37] : memref<72xf32, #tpu.memory_space<smem>>
      %59 = vector.broadcast %58 : f32 to vector<7x15xf32>
      %60 = arith.mulf %59, %45 : vector<7x15xf32>
      %61 = arith.addf %35, %60 : vector<7x15xf32>
      %c49 = arith.constant 49 : index
      %62 = memref.load %arg3[%c49] : memref<72xf32, #tpu.memory_space<smem>>
      %63 = vector.broadcast %62 : f32 to vector<7x15xf32>
      %64 = arith.mulf %63, %45 : vector<7x15xf32>
      %65 = arith.addf %39, %64 : vector<7x15xf32>
      %c61 = arith.constant 61 : index
      %66 = memref.load %arg3[%c61] : memref<72xf32, #tpu.memory_space<smem>>
      %67 = vector.broadcast %66 : f32 to vector<7x15xf32>
      %68 = arith.mulf %67, %45 : vector<7x15xf32>
      %69 = arith.addf %43, %68 : vector<7x15xf32>
      %c0_11 = arith.constant 0 : index
      %c0_12 = arith.constant 0 : index
      %c9 = arith.constant 9 : index
      %c0_13 = arith.constant 0 : index
      %70 = vector.load %arg2[%c0_11, %c0_12, %c9, %c0_13] : memref<1x3x16x16xf32, #tpu.memory_space<vmem>>, vector<1x1x7x15xf32>
      %71 = vector.shape_cast %70 : vector<1x1x7x15xf32> to vector<7x15xf32>
      %c2_14 = arith.constant 2 : index
      %72 = memref.load %arg3[%c2_14] : memref<72xf32, #tpu.memory_space<smem>>
      %73 = vector.broadcast %72 : f32 to vector<7x15xf32>
      %74 = arith.mulf %73, %71 : vector<7x15xf32>
      %75 = arith.addf %49, %74 : vector<7x15xf32>
      %c14 = arith.constant 14 : index
      %76 = memref.load %arg3[%c14] : memref<72xf32, #tpu.memory_space<smem>>
      %77 = vector.broadcast %76 : f32 to vector<7x15xf32>
      %78 = arith.mulf %77, %71 : vector<7x15xf32>
      %79 = arith.addf %53, %78 : vector<7x15xf32>
      %c26 = arith.constant 26 : index
      %80 = memref.load %arg3[%c26] : memref<72xf32, #tpu.memory_space<smem>>
      %81 = vector.broadcast %80 : f32 to vector<7x15xf32>
      %82 = arith.mulf %81, %71 : vector<7x15xf32>
      %83 = arith.addf %57, %82 : vector<7x15xf32>
      %c38 = arith.constant 38 : index
      %84 = memref.load %arg3[%c38] : memref<72xf32, #tpu.memory_space<smem>>
      %85 = vector.broadcast %84 : f32 to vector<7x15xf32>
      %86 = arith.mulf %85, %71 : vector<7x15xf32>
      %87 = arith.addf %61, %86 : vector<7x15xf32>
      %c50 = arith.constant 50 : index
      %88 = memref.load %arg3[%c50] : memref<72xf32, #tpu.memory_space<smem>>
      %89 = vector.broadcast %88 : f32 to vector<7x15xf32>
      %90 = arith.mulf %89, %71 : vector<7x15xf32>
      %91 = arith.addf %65, %90 : vector<7x15xf32>
      %c62 = arith.constant 62 : index
      %92 = memref.load %arg3[%c62] : memref<72xf32, #tpu.memory_space<smem>>
      %93 = vector.broadcast %92 : f32 to vector<7x15xf32>
      %94 = arith.mulf %93, %71 : vector<7x15xf32>
      %95 = arith.addf %69, %94 : vector<7x15xf32>
      %c0_15 = arith.constant 0 : index
      %c0_16 = arith.constant 0 : index
      %c9_17 = arith.constant 9 : index
      %c1_18 = arith.constant 1 : index
      %96 = vector.load %arg2[%c0_15, %c0_16, %c9_17, %c1_18] : memref<1x3x16x16xf32, #tpu.memory_space<vmem>>, vector<1x1x7x15xf32>
      %97 = vector.shape_cast %96 : vector<1x1x7x15xf32> to vector<7x15xf32>
      %c3_19 = arith.constant 3 : index
      %98 = memref.load %arg3[%c3_19] : memref<72xf32, #tpu.memory_space<smem>>
      %99 = vector.broadcast %98 : f32 to vector<7x15xf32>
      %100 = arith.mulf %99, %97 : vector<7x15xf32>
      %101 = arith.addf %75, %100 : vector<7x15xf32>
      %c15 = arith.constant 15 : index
      %102 = memref.load %arg3[%c15] : memref<72xf32, #tpu.memory_space<smem>>
      %103 = vector.broadcast %102 : f32 to vector<7x15xf32>
      %104 = arith.mulf %103, %97 : vector<7x15xf32>
      %105 = arith.addf %79, %104 : vector<7x15xf32>
      %c27 = arith.constant 27 : index
      %106 = memref.load %arg3[%c27] : memref<72xf32, #tpu.memory_space<smem>>
      %107 = vector.broadcast %106 : f32 to vector<7x15xf32>
      %108 = arith.mulf %107, %97 : vector<7x15xf32>
      %109 = arith.addf %83, %108 : vector<7x15xf32>
      %c39 = arith.constant 39 : index
      %110 = memref.load %arg3[%c39] : memref<72xf32, #tpu.memory_space<smem>>
      %111 = vector.broadcast %110 : f32 to vector<7x15xf32>
      %112 = arith.mulf %111, %97 : vector<7x15xf32>
      %113 = arith.addf %87, %112 : vector<7x15xf32>
      %c51 = arith.constant 51 : index
      %114 = memref.load %arg3[%c51] : memref<72xf32, #tpu.memory_space<smem>>
      %115 = vector.broadcast %114 : f32 to vector<7x15xf32>
      %116 = arith.mulf %115, %97 : vector<7x15xf32>
      %117 = arith.addf %91, %116 : vector<7x15xf32>
      %c63 = arith.constant 63 : index
      %118 = memref.load %arg3[%c63] : memref<72xf32, #tpu.memory_space<smem>>
      %119 = vector.broadcast %118 : f32 to vector<7x15xf32>
      %120 = arith.mulf %119, %97 : vector<7x15xf32>
      %121 = arith.addf %95, %120 : vector<7x15xf32>
      %c0_20 = arith.constant 0 : index
      %c1_21 = arith.constant 1 : index
      %c8_22 = arith.constant 8 : index
      %c0_23 = arith.constant 0 : index
      %122 = vector.load %arg2[%c0_20, %c1_21, %c8_22, %c0_23] : memref<1x3x16x16xf32, #tpu.memory_space<vmem>>, vector<1x1x7x15xf32>
      %123 = vector.shape_cast %122 : vector<1x1x7x15xf32> to vector<7x15xf32>
      %c4_24 = arith.constant 4 : index
      %124 = memref.load %arg3[%c4_24] : memref<72xf32, #tpu.memory_space<smem>>
      %125 = vector.broadcast %124 : f32 to vector<7x15xf32>
      %126 = arith.mulf %125, %123 : vector<7x15xf32>
      %127 = arith.addf %101, %126 : vector<7x15xf32>
      %c16 = arith.constant 16 : index
      %128 = memref.load %arg3[%c16] : memref<72xf32, #tpu.memory_space<smem>>
      %129 = vector.broadcast %128 : f32 to vector<7x15xf32>
      %130 = arith.mulf %129, %123 : vector<7x15xf32>
      %131 = arith.addf %105, %130 : vector<7x15xf32>
      %c28 = arith.constant 28 : index
      %132 = memref.load %arg3[%c28] : memref<72xf32, #tpu.memory_space<smem>>
      %133 = vector.broadcast %132 : f32 to vector<7x15xf32>
      %134 = arith.mulf %133, %123 : vector<7x15xf32>
      %135 = arith.addf %109, %134 : vector<7x15xf32>
      %c40 = arith.constant 40 : index
      %136 = memref.load %arg3[%c40] : memref<72xf32, #tpu.memory_space<smem>>
      %137 = vector.broadcast %136 : f32 to vector<7x15xf32>
      %138 = arith.mulf %137, %123 : vector<7x15xf32>
      %139 = arith.addf %113, %138 : vector<7x15xf32>
      %c52 = arith.constant 52 : index
      %140 = memref.load %arg3[%c52] : memref<72xf32, #tpu.memory_space<smem>>
      %141 = vector.broadcast %140 : f32 to vector<7x15xf32>
      %142 = arith.mulf %141, %123 : vector<7x15xf32>
      %143 = arith.addf %117, %142 : vector<7x15xf32>
      %c64 = arith.constant 64 : index
      %144 = memref.load %arg3[%c64] : memref<72xf32, #tpu.memory_space<smem>>
      %145 = vector.broadcast %144 : f32 to vector<7x15xf32>
      %146 = arith.mulf %145, %123 : vector<7x15xf32>
      %147 = arith.addf %121, %146 : vector<7x15xf32>
      %c0_25 = arith.constant 0 : index
      %c1_26 = arith.constant 1 : index
      %c8_27 = arith.constant 8 : index
      %c1_28 = arith.constant 1 : index
      %148 = vector.load %arg2[%c0_25, %c1_26, %c8_27, %c1_28] : memref<1x3x16x16xf32, #tpu.memory_space<vmem>>, vector<1x1x7x15xf32>
      %149 = vector.shape_cast %148 : vector<1x1x7x15xf32> to vector<7x15xf32>
      %c5_29 = arith.constant 5 : index
      %150 = memref.load %arg3[%c5_29] : memref<72xf32, #tpu.memory_space<smem>>
      %151 = vector.broadcast %150 : f32 to vector<7x15xf32>
      %152 = arith.mulf %151, %149 : vector<7x15xf32>
      %153 = arith.addf %127, %152 : vector<7x15xf32>
      %c17 = arith.constant 17 : index
      %154 = memref.load %arg3[%c17] : memref<72xf32, #tpu.memory_space<smem>>
      %155 = vector.broadcast %154 : f32 to vector<7x15xf32>
      %156 = arith.mulf %155, %149 : vector<7x15xf32>
      %157 = arith.addf %131, %156 : vector<7x15xf32>
      %c29 = arith.constant 29 : index
      %158 = memref.load %arg3[%c29] : memref<72xf32, #tpu.memory_space<smem>>
      %159 = vector.broadcast %158 : f32 to vector<7x15xf32>
      %160 = arith.mulf %159, %149 : vector<7x15xf32>
      %161 = arith.addf %135, %160 : vector<7x15xf32>
      %c41 = arith.constant 41 : index
      %162 = memref.load %arg3[%c41] : memref<72xf32, #tpu.memory_space<smem>>
      %163 = vector.broadcast %162 : f32 to vector<7x15xf32>
      %164 = arith.mulf %163, %149 : vector<7x15xf32>
      %165 = arith.addf %139, %164 : vector<7x15xf32>
      %c53 = arith.constant 53 : index
      %166 = memref.load %arg3[%c53] : memref<72xf32, #tpu.memory_space<smem>>
      %167 = vector.broadcast %166 : f32 to vector<7x15xf32>
      %168 = arith.mulf %167, %149 : vector<7x15xf32>
      %169 = arith.addf %143, %168 : vector<7x15xf32>
      %c65 = arith.constant 65 : index
      %170 = memref.load %arg3[%c65] : memref<72xf32, #tpu.memory_space<smem>>
      %171 = vector.broadcast %170 : f32 to vector<7x15xf32>
      %172 = arith.mulf %171, %149 : vector<7x15xf32>
      %173 = arith.addf %147, %172 : vector<7x15xf32>
      %c0_30 = arith.constant 0 : index
      %c1_31 = arith.constant 1 : index
      %c9_32 = arith.constant 9 : index
      %c0_33 = arith.constant 0 : index
      %174 = vector.load %arg2[%c0_30, %c1_31, %c9_32, %c0_33] : memref<1x3x16x16xf32, #tpu.memory_space<vmem>>, vector<1x1x7x15xf32>
      %175 = vector.shape_cast %174 : vector<1x1x7x15xf32> to vector<7x15xf32>
      %c6 = arith.constant 6 : index
      %176 = memref.load %arg3[%c6] : memref<72xf32, #tpu.memory_space<smem>>
      %177 = vector.broadcast %176 : f32 to vector<7x15xf32>
      %178 = arith.mulf %177, %175 : vector<7x15xf32>
      %179 = arith.addf %153, %178 : vector<7x15xf32>
      %c18 = arith.constant 18 : index
      %180 = memref.load %arg3[%c18] : memref<72xf32, #tpu.memory_space<smem>>
      %181 = vector.broadcast %180 : f32 to vector<7x15xf32>
      %182 = arith.mulf %181, %175 : vector<7x15xf32>
      %183 = arith.addf %157, %182 : vector<7x15xf32>
      %c30 = arith.constant 30 : index
      %184 = memref.load %arg3[%c30] : memref<72xf32, #tpu.memory_space<smem>>
      %185 = vector.broadcast %184 : f32 to vector<7x15xf32>
      %186 = arith.mulf %185, %175 : vector<7x15xf32>
      %187 = arith.addf %161, %186 : vector<7x15xf32>
      %c42 = arith.constant 42 : index
      %188 = memref.load %arg3[%c42] : memref<72xf32, #tpu.memory_space<smem>>
      %189 = vector.broadcast %188 : f32 to vector<7x15xf32>
      %190 = arith.mulf %189, %175 : vector<7x15xf32>
      %191 = arith.addf %165, %190 : vector<7x15xf32>
      %c54 = arith.constant 54 : index
      %192 = memref.load %arg3[%c54] : memref<72xf32, #tpu.memory_space<smem>>
      %193 = vector.broadcast %192 : f32 to vector<7x15xf32>
      %194 = arith.mulf %193, %175 : vector<7x15xf32>
      %195 = arith.addf %169, %194 : vector<7x15xf32>
      %c66 = arith.constant 66 : index
      %196 = memref.load %arg3[%c66] : memref<72xf32, #tpu.memory_space<smem>>
      %197 = vector.broadcast %196 : f32 to vector<7x15xf32>
      %198 = arith.mulf %197, %175 : vector<7x15xf32>
      %199 = arith.addf %173, %198 : vector<7x15xf32>
      %c0_34 = arith.constant 0 : index
      %c1_35 = arith.constant 1 : index
      %c9_36 = arith.constant 9 : index
      %c1_37 = arith.constant 1 : index
      %200 = vector.load %arg2[%c0_34, %c1_35, %c9_36, %c1_37] : memref<1x3x16x16xf32, #tpu.memory_space<vmem>>, vector<1x1x7x15xf32>
      %201 = vector.shape_cast %200 : vector<1x1x7x15xf32> to vector<7x15xf32>
      %c7 = arith.constant 7 : index
      %202 = memref.load %arg3[%c7] : memref<72xf32, #tpu.memory_space<smem>>
      %203 = vector.broadcast %202 : f32 to vector<7x15xf32>
      %204 = arith.mulf %203, %201 : vector<7x15xf32>
      %205 = arith.addf %179, %204 : vector<7x15xf32>
      %c19 = arith.constant 19 : index
      %206 = memref.load %arg3[%c19] : memref<72xf32, #tpu.memory_space<smem>>
      %207 = vector.broadcast %206 : f32 to vector<7x15xf32>
      %208 = arith.mulf %207, %201 : vector<7x15xf32>
      %209 = arith.addf %183, %208 : vector<7x15xf32>
      %c31 = arith.constant 31 : index
      %210 = memref.load %arg3[%c31] : memref<72xf32, #tpu.memory_space<smem>>
      %211 = vector.broadcast %210 : f32 to vector<7x15xf32>
      %212 = arith.mulf %211, %201 : vector<7x15xf32>
      %213 = arith.addf %187, %212 : vector<7x15xf32>
      %c43 = arith.constant 43 : index
      %214 = memref.load %arg3[%c43] : memref<72xf32, #tpu.memory_space<smem>>
      %215 = vector.broadcast %214 : f32 to vector<7x15xf32>
      %216 = arith.mulf %215, %201 : vector<7x15xf32>
      %217 = arith.addf %191, %216 : vector<7x15xf32>
      %c55 = arith.constant 55 : index
      %218 = memref.load %arg3[%c55] : memref<72xf32, #tpu.memory_space<smem>>
      %219 = vector.broadcast %218 : f32 to vector<7x15xf32>
      %220 = arith.mulf %219, %201 : vector<7x15xf32>
      %221 = arith.addf %195, %220 : vector<7x15xf32>
      %c67 = arith.constant 67 : index
      %222 = memref.load %arg3[%c67] : memref<72xf32, #tpu.memory_space<smem>>
      %223 = vector.broadcast %222 : f32 to vector<7x15xf32>
      %224 = arith.mulf %223, %201 : vector<7x15xf32>
      %225 = arith.addf %199, %224 : vector<7x15xf32>
      %c0_38 = arith.constant 0 : index
      %c2_39 = arith.constant 2 : index
      %c8_40 = arith.constant 8 : index
      %c0_41 = arith.constant 0 : index
      %226 = vector.load %arg2[%c0_38, %c2_39, %c8_40, %c0_41] : memref<1x3x16x16xf32, #tpu.memory_space<vmem>>, vector<1x1x7x15xf32>
      %227 = vector.shape_cast %226 : vector<1x1x7x15xf32> to vector<7x15xf32>
      %c8_42 = arith.constant 8 : index
      %228 = memref.load %arg3[%c8_42] : memref<72xf32, #tpu.memory_space<smem>>
      %229 = vector.broadcast %228 : f32 to vector<7x15xf32>
      %230 = arith.mulf %229, %227 : vector<7x15xf32>
      %231 = arith.addf %205, %230 : vector<7x15xf32>
      %c20 = arith.constant 20 : index
      %232 = memref.load %arg3[%c20] : memref<72xf32, #tpu.memory_space<smem>>
      %233 = vector.broadcast %232 : f32 to vector<7x15xf32>
      %234 = arith.mulf %233, %227 : vector<7x15xf32>
      %235 = arith.addf %209, %234 : vector<7x15xf32>
      %c32 = arith.constant 32 : index
      %236 = memref.load %arg3[%c32] : memref<72xf32, #tpu.memory_space<smem>>
      %237 = vector.broadcast %236 : f32 to vector<7x15xf32>
      %238 = arith.mulf %237, %227 : vector<7x15xf32>
      %239 = arith.addf %213, %238 : vector<7x15xf32>
      %c44 = arith.constant 44 : index
      %240 = memref.load %arg3[%c44] : memref<72xf32, #tpu.memory_space<smem>>
      %241 = vector.broadcast %240 : f32 to vector<7x15xf32>
      %242 = arith.mulf %241, %227 : vector<7x15xf32>
      %243 = arith.addf %217, %242 : vector<7x15xf32>
      %c56 = arith.constant 56 : index
      %244 = memref.load %arg3[%c56] : memref<72xf32, #tpu.memory_space<smem>>
      %245 = vector.broadcast %244 : f32 to vector<7x15xf32>
      %246 = arith.mulf %245, %227 : vector<7x15xf32>
      %247 = arith.addf %221, %246 : vector<7x15xf32>
      %c68 = arith.constant 68 : index
      %248 = memref.load %arg3[%c68] : memref<72xf32, #tpu.memory_space<smem>>
      %249 = vector.broadcast %248 : f32 to vector<7x15xf32>
      %250 = arith.mulf %249, %227 : vector<7x15xf32>
      %251 = arith.addf %225, %250 : vector<7x15xf32>
      %c0_43 = arith.constant 0 : index
      %c2_44 = arith.constant 2 : index
      %c8_45 = arith.constant 8 : index
      %c1_46 = arith.constant 1 : index
      %252 = vector.load %arg2[%c0_43, %c2_44, %c8_45, %c1_46] : memref<1x3x16x16xf32, #tpu.memory_space<vmem>>, vector<1x1x7x15xf32>
      %253 = vector.shape_cast %252 : vector<1x1x7x15xf32> to vector<7x15xf32>
      %c9_47 = arith.constant 9 : index
      %254 = memref.load %arg3[%c9_47] : memref<72xf32, #tpu.memory_space<smem>>
      %255 = vector.broadcast %254 : f32 to vector<7x15xf32>
      %256 = arith.mulf %255, %253 : vector<7x15xf32>
      %257 = arith.addf %231, %256 : vector<7x15xf32>
      %c21 = arith.constant 21 : index
      %258 = memref.load %arg3[%c21] : memref<72xf32, #tpu.memory_space<smem>>
      %259 = vector.broadcast %258 : f32 to vector<7x15xf32>
      %260 = arith.mulf %259, %253 : vector<7x15xf32>
      %261 = arith.addf %235, %260 : vector<7x15xf32>
      %c33 = arith.constant 33 : index
      %262 = memref.load %arg3[%c33] : memref<72xf32, #tpu.memory_space<smem>>
      %263 = vector.broadcast %262 : f32 to vector<7x15xf32>
      %264 = arith.mulf %263, %253 : vector<7x15xf32>
      %265 = arith.addf %239, %264 : vector<7x15xf32>
      %c45 = arith.constant 45 : index
      %266 = memref.load %arg3[%c45] : memref<72xf32, #tpu.memory_space<smem>>
      %267 = vector.broadcast %266 : f32 to vector<7x15xf32>
      %268 = arith.mulf %267, %253 : vector<7x15xf32>
      %269 = arith.addf %243, %268 : vector<7x15xf32>
      %c57 = arith.constant 57 : index
      %270 = memref.load %arg3[%c57] : memref<72xf32, #tpu.memory_space<smem>>
      %271 = vector.broadcast %270 : f32 to vector<7x15xf32>
      %272 = arith.mulf %271, %253 : vector<7x15xf32>
      %273 = arith.addf %247, %272 : vector<7x15xf32>
      %c69 = arith.constant 69 : index
      %274 = memref.load %arg3[%c69] : memref<72xf32, #tpu.memory_space<smem>>
      %275 = vector.broadcast %274 : f32 to vector<7x15xf32>
      %276 = arith.mulf %275, %253 : vector<7x15xf32>
      %277 = arith.addf %251, %276 : vector<7x15xf32>
      %c0_48 = arith.constant 0 : index
      %c2_49 = arith.constant 2 : index
      %c9_50 = arith.constant 9 : index
      %c0_51 = arith.constant 0 : index
      %278 = vector.load %arg2[%c0_48, %c2_49, %c9_50, %c0_51] : memref<1x3x16x16xf32, #tpu.memory_space<vmem>>, vector<1x1x7x15xf32>
      %279 = vector.shape_cast %278 : vector<1x1x7x15xf32> to vector<7x15xf32>
      %c10 = arith.constant 10 : index
      %280 = memref.load %arg3[%c10] : memref<72xf32, #tpu.memory_space<smem>>
      %281 = vector.broadcast %280 : f32 to vector<7x15xf32>
      %282 = arith.mulf %281, %279 : vector<7x15xf32>
      %283 = arith.addf %257, %282 : vector<7x15xf32>
      %c22 = arith.constant 22 : index
      %284 = memref.load %arg3[%c22] : memref<72xf32, #tpu.memory_space<smem>>
      %285 = vector.broadcast %284 : f32 to vector<7x15xf32>
      %286 = arith.mulf %285, %279 : vector<7x15xf32>
      %287 = arith.addf %261, %286 : vector<7x15xf32>
      %c34 = arith.constant 34 : index
      %288 = memref.load %arg3[%c34] : memref<72xf32, #tpu.memory_space<smem>>
      %289 = vector.broadcast %288 : f32 to vector<7x15xf32>
      %290 = arith.mulf %289, %279 : vector<7x15xf32>
      %291 = arith.addf %265, %290 : vector<7x15xf32>
      %c46 = arith.constant 46 : index
      %292 = memref.load %arg3[%c46] : memref<72xf32, #tpu.memory_space<smem>>
      %293 = vector.broadcast %292 : f32 to vector<7x15xf32>
      %294 = arith.mulf %293, %279 : vector<7x15xf32>
      %295 = arith.addf %269, %294 : vector<7x15xf32>
      %c58 = arith.constant 58 : index
      %296 = memref.load %arg3[%c58] : memref<72xf32, #tpu.memory_space<smem>>
      %297 = vector.broadcast %296 : f32 to vector<7x15xf32>
      %298 = arith.mulf %297, %279 : vector<7x15xf32>
      %299 = arith.addf %273, %298 : vector<7x15xf32>
      %c70 = arith.constant 70 : index
      %300 = memref.load %arg3[%c70] : memref<72xf32, #tpu.memory_space<smem>>
      %301 = vector.broadcast %300 : f32 to vector<7x15xf32>
      %302 = arith.mulf %301, %279 : vector<7x15xf32>
      %303 = arith.addf %277, %302 : vector<7x15xf32>
      %c0_52 = arith.constant 0 : index
      %c2_53 = arith.constant 2 : index
      %c9_54 = arith.constant 9 : index
      %c1_55 = arith.constant 1 : index
      %304 = vector.load %arg2[%c0_52, %c2_53, %c9_54, %c1_55] : memref<1x3x16x16xf32, #tpu.memory_space<vmem>>, vector<1x1x7x15xf32>
      %305 = vector.shape_cast %304 : vector<1x1x7x15xf32> to vector<7x15xf32>
      %c11 = arith.constant 11 : index
      %306 = memref.load %arg3[%c11] : memref<72xf32, #tpu.memory_space<smem>>
      %307 = vector.broadcast %306 : f32 to vector<7x15xf32>
      %308 = arith.mulf %307, %305 : vector<7x15xf32>
      %309 = arith.addf %283, %308 : vector<7x15xf32>
      %c23 = arith.constant 23 : index
      %310 = memref.load %arg3[%c23] : memref<72xf32, #tpu.memory_space<smem>>
      %311 = vector.broadcast %310 : f32 to vector<7x15xf32>
      %312 = arith.mulf %311, %305 : vector<7x15xf32>
      %313 = arith.addf %287, %312 : vector<7x15xf32>
      %c35 = arith.constant 35 : index
      %314 = memref.load %arg3[%c35] : memref<72xf32, #tpu.memory_space<smem>>
      %315 = vector.broadcast %314 : f32 to vector<7x15xf32>
      %316 = arith.mulf %315, %305 : vector<7x15xf32>
      %317 = arith.addf %291, %316 : vector<7x15xf32>
      %c47 = arith.constant 47 : index
      %318 = memref.load %arg3[%c47] : memref<72xf32, #tpu.memory_space<smem>>
      %319 = vector.broadcast %318 : f32 to vector<7x15xf32>
      %320 = arith.mulf %319, %305 : vector<7x15xf32>
      %321 = arith.addf %295, %320 : vector<7x15xf32>
      %c59 = arith.constant 59 : index
      %322 = memref.load %arg3[%c59] : memref<72xf32, #tpu.memory_space<smem>>
      %323 = vector.broadcast %322 : f32 to vector<7x15xf32>
      %324 = arith.mulf %323, %305 : vector<7x15xf32>
      %325 = arith.addf %299, %324 : vector<7x15xf32>
      %c71 = arith.constant 71 : index
      %326 = memref.load %arg3[%c71] : memref<72xf32, #tpu.memory_space<smem>>
      %327 = vector.broadcast %326 : f32 to vector<7x15xf32>
      %328 = arith.mulf %327, %305 : vector<7x15xf32>
      %329 = arith.addf %303, %328 : vector<7x15xf32>
      %c0_56 = arith.constant 0 : index
      %c0_57 = arith.constant 0 : index
      %c0_58 = arith.constant 0 : index
      %c0_59 = arith.constant 0 : index
      %330 = vector.load %arg5[%c0_56, %c0_57, %c0_58, %c0_59] : memref<1x6x8x15xf32, #tpu.memory_space<vmem>>, vector<1x1x7x15xf32>
      %331 = vector.shape_cast %330 : vector<1x1x7x15xf32> to vector<7x15xf32>
      %332 = vector.shape_cast %309 : vector<7x15xf32> to vector<1x1x7x15xf32>
      tpu.vector_store %arg5[%c0_56, %c0_57, %c0_58, %c0_59], %332 {strides = array<i32>} : memref<1x6x8x15xf32, #tpu.memory_space<vmem>>, vector<1x1x7x15xf32>,
      %c0_60 = arith.constant 0 : index
      %c1_61 = arith.constant 1 : index
      %c0_62 = arith.constant 0 : index
      %c0_63 = arith.constant 0 : index
      %333 = vector.load %arg5[%c0_60, %c1_61, %c0_62, %c0_63] : memref<1x6x8x15xf32, #tpu.memory_space<vmem>>, vector<1x1x7x15xf32>
      %334 = vector.shape_cast %333 : vector<1x1x7x15xf32> to vector<7x15xf32>
      %335 = vector.shape_cast %313 : vector<7x15xf32> to vector<1x1x7x15xf32>
      tpu.vector_store %arg5[%c0_60, %c1_61, %c0_62, %c0_63], %335 {strides = array<i32>} : memref<1x6x8x15xf32, #tpu.memory_space<vmem>>, vector<1x1x7x15xf32>,
      %c0_64 = arith.constant 0 : index
      %c2_65 = arith.constant 2 : index
      %c0_66 = arith.constant 0 : index
      %c0_67 = arith.constant 0 : index
      %336 = vector.load %arg5[%c0_64, %c2_65, %c0_66, %c0_67] : memref<1x6x8x15xf32, #tpu.memory_space<vmem>>, vector<1x1x7x15xf32>
      %337 = vector.shape_cast %336 : vector<1x1x7x15xf32> to vector<7x15xf32>
      %338 = vector.shape_cast %317 : vector<7x15xf32> to vector<1x1x7x15xf32>
      tpu.vector_store %arg5[%c0_64, %c2_65, %c0_66, %c0_67], %338 {strides = array<i32>} : memref<1x6x8x15xf32, #tpu.memory_space<vmem>>, vector<1x1x7x15xf32>,
      %c0_68 = arith.constant 0 : index
      %c3_69 = arith.constant 3 : index
      %c0_70 = arith.constant 0 : index
      %c0_71 = arith.constant 0 : index
      %339 = vector.load %arg5[%c0_68, %c3_69, %c0_70, %c0_71] : memref<1x6x8x15xf32, #tpu.memory_space<vmem>>, vector<1x1x7x15xf32>
      %340 = vector.shape_cast %339 : vector<1x1x7x15xf32> to vector<7x15xf32>
      %341 = vector.shape_cast %321 : vector<7x15xf32> to vector<1x1x7x15xf32>
      tpu.vector_store %arg5[%c0_68, %c3_69, %c0_70, %c0_71], %341 {strides = array<i32>} : memref<1x6x8x15xf32, #tpu.memory_space<vmem>>, vector<1x1x7x15xf32>,
      %c0_72 = arith.constant 0 : index
      %c4_73 = arith.constant 4 : index
      %c0_74 = arith.constant 0 : index
      %c0_75 = arith.constant 0 : index
      %342 = vector.load %arg5[%c0_72, %c4_73, %c0_74, %c0_75] : memref<1x6x8x15xf32, #tpu.memory_space<vmem>>, vector<1x1x7x15xf32>
      %343 = vector.shape_cast %342 : vector<1x1x7x15xf32> to vector<7x15xf32>
      %344 = vector.shape_cast %325 : vector<7x15xf32> to vector<1x1x7x15xf32>
      tpu.vector_store %arg5[%c0_72, %c4_73, %c0_74, %c0_75], %344 {strides = array<i32>} : memref<1x6x8x15xf32, #tpu.memory_space<vmem>>, vector<1x1x7x15xf32>,
      %c0_76 = arith.constant 0 : index
      %c5_77 = arith.constant 5 : index
      %c0_78 = arith.constant 0 : index
      %c0_79 = arith.constant 0 : index
      %345 = vector.load %arg5[%c0_76, %c5_77, %c0_78, %c0_79] : memref<1x6x8x15xf32, #tpu.memory_space<vmem>>, vector<1x1x7x15xf32>
      %346 = vector.shape_cast %345 : vector<1x1x7x15xf32> to vector<7x15xf32>
      %347 = vector.shape_cast %329 : vector<7x15xf32> to vector<1x1x7x15xf32>
      tpu.vector_store %arg5[%c0_76, %c5_77, %c0_78, %c0_79], %347 {strides = array<i32>} : memref<1x6x8x15xf32, #tpu.memory_space<vmem>>, vector<1x1x7x15xf32>,
    } else {
    }
    return
  }
  func.func @transform_0(%arg0: i32, %arg1: i32) -> (i32, i32, i32, i32) {
    %c0_i32 = arith.constant 0 : i32
    %c0_i32_0 = arith.constant 0 : i32
    %c0_i32_1 = arith.constant 0 : i32
    %c0_i32_2 = arith.constant 0 : i32
    return %arg0, %c0_i32, %c0_i32_0, %c0_i32_1 : i32, i32, i32, i32
  }
  func.func @transform_1(%arg0: i32, %arg1: i32) -> i32 {
    %c0_i32 = arith.constant 0 : i32
    %c0_i32_0 = arith.constant 0 : i32
    return %c0_i32 : i32
  }
  func.func @transform_2(%arg0: i32, %arg1: i32) -> i32 {
    %c0_i32 = arith.constant 0 : i32
    %c0_i32_0 = arith.constant 0 : i32
    return %c0_i32 : i32
  }
  func.func @transform_3(%arg0: i32, %arg1: i32) -> (i32, i32, i32, i32) {
    %c0_i32 = arith.constant 0 : i32
    %c0_i32_0 = arith.constant 0 : i32
    %c0_i32_1 = arith.constant 0 : i32
    return %arg0, %c0_i32, %arg1, %c0_i32_0 : i32, i32, i32, i32
  }
}

</mosaic_0001>

<llo_original>
// kernel: conv2d_pallas.1
$region0: #{conv2d_pallas.1}
  #allocation0 [shape = 'u32[]', space=smem, size = 0x4, offset = 0x4, fixed_abs, tag = 'smem constant byte address 0x4 - core index']
  #allocation1 [shape = 'u32[144,128]{1,0:T(1,128)}', space=vmem, size = 0x12000, scoped, tag = 'internal scratch']
  %s0 = inlined_call_operand.hbm [shape: f32[2,3,16,16], index: 0, kind: input, shape index: {}]
  %s1 = inlined_call_operand.vmem [shape: f32[72], index: 1, kind: input, shape index: {}]
  %s2 = inlined_call_operand.vmem [shape: f32[6], index: 2, kind: input, shape index: {}]
  %s3 = inlined_call_operand.vmem [shape: f32[2,6,15,15], index: 3, kind: output, shape index: {}]
  %s4 = sld [smem:[#allocation0]]
  $region99: #{conv2d_pallas.1} parent=0
    _
  %s6 = ssub.s32 1, %s4
  %s7 = scalar_select 0, %s6, %s4
  $region1: #{conv2d_pallas.1} parent=0
    #allocation2 [shape = 'u8[49152]{0}', space=vmem, size = 0xc000, scoped, tag = 'input window, operand 0']
    #allocation3 [shape = 's32[2]{0}', space=sflag, size = 0x8, scoped, tag = 'scoped memory for conv2d_pallas.1']
    #allocation4 [shape = 's32[2]{0}', space=sflag, size = 0x8, scoped, tag = 'scoped memory for conv2d_pallas.1']
    #allocation5 [shape = 'u8[512]{0}', space=smem, size = 0x200, scoped, tag = 'input window, operand 1, single buffered']
    #allocation6 [shape = 'u8[512]{0}', space=smem, size = 0x200, scoped, tag = 'input window, operand 2, single buffered']
    #allocation7 [shape = 's32[1]{0}', space=sflag, size = 0x4, scoped, tag = 'scoped memory for conv2d_pallas.1']
    #allocation8 [shape = 'u8[49152]{0}', space=vmem, size = 0xc000, scoped, tag = 'output window, operand 0']
    %8 = vsyncpa [#allocation3], 0
    %s9 = scalar_lea.sflag [#allocation3], 1
    %10 = vsyncpa %s9, 0
    %11 = vsyncpa [#allocation4], 0
    %12 = vsyncpa [#allocation7], 0
    loop: start=0, step=1, limit=6
    $region2: #{conv2d_pallas.1} parent=1 // loop_pre_header
      _
    $region3: #{conv2d_pallas.1} parent=1 // loop_header
      %s14 = sphi 0, %s18
      %p15 = scmp.ge.s32.totalorder %s14, 6
      %s21 = sphi 0, %s33
      %s22 = sphi 0, %s29
      %s23 = sphi 0, %s21
      %s24 = sphi 0, %s22
      %s25 = sphi 0, %s23
      %s26 = sphi 0, %s24
      %s36 = sphi 0, %s38
      %s39 = sphi 0, %s36
      %s40 = sphi 0, %s39
      %s56 = sphi 0, %s40
      %s60 = sphi 0, %s60
      %s62 = sphi 0, %s60
      %s63 = sphi 0, %s62
      %s77 = sphi 0, %s63
      %s81 = sphi 0, %s81
      %s83 = sphi 0, %s81
      %s84 = sphi 0, %s83
      %s98 = sphi 0, %s84
      %s106 = sphi 0, %s108
      %s109 = sphi 0, %s106
      %s110 = sphi 0, %s109
      %s126 = sphi 0, %s110
    $region4: #{conv2d_pallas.1} parent=1 // loop_header_branch
      %17 = sbr.rel (%p15) target = $region8
    $region5: #{conv2d_pallas.1} parent=1 // loop_body
      %s19 = ssub.s32 %s14, 1
      %s20 = ssub.s32 %s14, 2
      %s27 = sadd.s32 1, %s22
      %p28 = scmp.ge.s32.totalorder %s27, 2
      %s29 = scalar_select %p28, 0, %s27
      %s30 = sadd.s32 1, %s21
      %s31 = scalar_select %p28, %s30, %s21
      %p32 = scmp.ge.s32.totalorder %s31, 2
      %s33 = scalar_select %p32, 0, %s31
      %s34 = ssub.s32 %s21, %s33
      %p35 = scmp.eq.s32.totalorder %s34, 0
      %s37 = sadd.s32 %s36, 1
      %s38 = scalar_select %p35, %s36, %s37
      %p41 = pneg %p35
      %p42 = scmp.eq.s32.totalorder %s14, 3
      %p43 = por %p41, %p42
      %p44 = scmp.ne.s32.totalorder %s36, %s39
      %p45 = scmp.eq.s32.totalorder %s14, 0
      %p46 = por %p44, %p45
      %p47 = scmp.ne.s32.totalorder %s36, %s39
      %p48 = scmp.eq.s32.totalorder %s19, 3
      %p49 = por %p47, %p48
      %p50 = scmp.ne.s32.totalorder %s39, %s40
      %p51 = scmp.eq.s32.totalorder %s19, 0
      %p52 = por %p50, %p51
      %p53 = scmp.ne.s32.totalorder %s39, %s40
      %p54 = scmp.eq.s32.totalorder %s20, 3
      %p55 = por %p53, %p54
      %p57 = scmp.ne.s32.totalorder %s40, %s56
      %p58 = scmp.eq.s32.totalorder %s20, 0
      %p59 = por %p57, %p58
      %s61 = sadd.s32 %s60, 1
      %p64 = scmp.eq.s32.totalorder %s14, 3
      %p65 = scmp.ne.s32.totalorder %s60, %s62
      %p66 = scmp.eq.s32.totalorder %s14, 0
      %p67 = por %p65, %p66
      %p68 = scmp.ne.s32.totalorder %s60, %s62
      %p69 = scmp.eq.s32.totalorder %s19, 3
      %p70 = por %p68, %p69
      %p71 = scmp.ne.s32.totalorder %s62, %s63
      %p72 = scmp.eq.s32.totalorder %s19, 0
      %p73 = por %p71, %p72
      %p74 = scmp.ne.s32.totalorder %s62, %s63
      %p75 = scmp.eq.s32.totalorder %s20, 3
      %p76 = por %p74, %p75
      %p78 = scmp.ne.s32.totalorder %s63, %s77
      %p79 = scmp.eq.s32.totalorder %s20, 0
      %p80 = por %p78, %p79
      %s82 = sadd.s32 %s81, 1
      %p85 = scmp.eq.s32.totalorder %s14, 3
      %p86 = scmp.ne.s32.totalorder %s81, %s83
      %p87 = scmp.eq.s32.totalorder %s14, 0
      %p88 = por %p86, %p87
      %p89 = scmp.ne.s32.totalorder %s81, %s83
      %p90 = scmp.eq.s32.totalorder %s19, 3
      %p91 = por %p89, %p90
      %p92 = scmp.ne.s32.totalorder %s83, %s84
      %p93 = scmp.eq.s32.totalorder %s19, 0
      %p94 = por %p92, %p93
      %p95 = scmp.ne.s32.totalorder %s83, %s84
      %p96 = scmp.eq.s32.totalorder %s20, 3
      %p97 = por %p95, %p96
      %p99 = scmp.ne.s32.totalorder %s84, %s98
      %p100 = scmp.eq.s32.totalorder %s20, 0
      %p101 = por %p99, %p100
      %s102 = ssub.s32 %s21, %s33
      %s103 = ssub.s32 %s22, %s29
      %s104 = sor.u32 %s102, %s103
      %p105 = scmp.eq.s32.totalorder %s104, 0
      %s107 = sadd.s32 %s106, 1
      %s108 = scalar_select %p105, %s106, %s107
      %p111 = pneg %p105
      %p112 = scmp.eq.s32.totalorder %s14, 3
      %p113 = por %p111, %p112
      %p114 = scmp.ne.s32.totalorder %s106, %s109
      %p115 = scmp.eq.s32.totalorder %s14, 0
      %p116 = por %p114, %p115
      %p117 = scmp.ne.s32.totalorder %s106, %s109
      %p118 = scmp.eq.s32.totalorder %s19, 3
      %p119 = por %p117, %p118
      %p120 = scmp.ne.s32.totalorder %s109, %s110
      %p121 = scmp.eq.s32.totalorder %s19, 0
      %p122 = por %p120, %p121
      %p123 = scmp.ne.s32.totalorder %s109, %s110
      %p124 = scmp.eq.s32.totalorder %s20, 3
      %p125 = por %p123, %p124
      %p127 = scmp.ne.s32.totalorder %s110, %s126
      %p128 = scmp.eq.s32.totalorder %s20, 0
      %p129 = por %p127, %p128
      %p130 = scmp.le.s32.totalorder 1, %s14
      %p131 = scmp.lt.s32.totalorder %s14, 5
      %p132 = pnand %p130, %p131
      %p133 = pneg %p132
      // Predicated region
      $region9: #{conv2d_pallas.1} parent=5 // pred_check
        _
      $region10: #{conv2d_pallas.1} parent=5 // pred_check_branch
        %135 = sbr.rel (%p132) target = $region12
      $region11: #{conv2d_pallas.1} parent=5 // pred_region
        %s136 = ssub.s32 %s14, 1
        // Predicated region
        $region13: #{conv2d_pallas.1} parent=11 // pred_check
          %p137 = pneg %p73
        $region14: #{conv2d_pallas.1} parent=11 // pred_check_branch
          %139 = sbr.rel (%p137) target = $region16
        $region15: #{conv2d_pallas.1} parent=11 // pred_region
          %s141 = ssub.s32 16, 16
          %142 = vsyncadd [#allocation4], %s141
          %s144 = sshll.u32 %s1, 4
          %s145 = int_to_ptr.vmem [resolvable:$true] %s144
          %147 = dma.vmem_to_smem %s145, 16, [#allocation5], [#allocation4]
        $region16: #{conv2d_pallas.1} parent=11 // pred_fallthru
          _
        // Predicated region
        $region17: #{conv2d_pallas.1} parent=11 // pred_check
          %p148 = pneg %p94
        $region18: #{conv2d_pallas.1} parent=11 // pred_check_branch
          %150 = sbr.rel (%p148) target = $region20
        $region19: #{conv2d_pallas.1} parent=11 // pred_region
          %s152 = ssub.s32 16, 16
          %153 = vsyncadd [#allocation7], %s152
          %s155 = sshll.u32 %s2, 4
          %s156 = int_to_ptr.vmem [resolvable:$true] %s155
          %158 = dma.vmem_to_smem %s156, 16, [#allocation6], [#allocation7]
        $region20: #{conv2d_pallas.1} parent=11 // pred_fallthru
          _
      $region12: #{conv2d_pallas.1} parent=5 // pred_fallthru
        _
      %p159 = scmp.lt.s32.totalorder %s14, 4
      // Predicated region
      $region21: #{conv2d_pallas.1} parent=5 // pred_check
        %p160 = pneg %p159
      $region22: #{conv2d_pallas.1} parent=5 // pred_check_branch
        %162 = sbr.rel (%p160) target = $region24
      $region23: #{conv2d_pallas.1} parent=5 // pred_region
        // Predicated region
        $region25: #{conv2d_pallas.1} parent=23 // pred_check
          %p163 = pneg %p46
        $region26: #{conv2d_pallas.1} parent=23 // pred_check_branch
          %165 = sbr.rel (%p163) target = $region28
        $region27: #{conv2d_pallas.1} parent=23 // pred_region
          %s166 = sand.u32 %s36, 1
          %s167 = scalar_lea.sflag [#allocation3], %s166
          %s168 = sand.u32 %s36, 1
          %s169 = smul.addr %s168, 48
          %s170 = scalar_lea.vmem [#allocation2], %s169
          %s172 = ssub.s32 768, 768
          %173 = vsyncadd %s167, %s172
          %s174 = smul.addr %s21, 6
          %s175 = smul.addr %s174, 128
          %s176 = scalar_lea.hbm %s0, %s175
          %s177 = sshll.u32 %s170, 4
          %s178 = int_to_ptr.vmem [resolvable:$true] %s177
          %183 = dma.hbm_to_vmem [thread:$0]  %s176, 768, %s178, %s167, 128, 128, 8
        $region28: #{conv2d_pallas.1} parent=23 // pred_fallthru
          _
      $region24: #{conv2d_pallas.1} parent=5 // pred_fallthru
        _
      %p184 = scmp.le.s32.totalorder 1, %s14
      %p185 = scmp.lt.s32.totalorder %s14, 5
      %p186 = pnand %p184, %p185
      %p187 = pneg %p186
      // Predicated region
      $region29: #{conv2d_pallas.1} parent=5 // pred_check
        _
      $region30: #{conv2d_pallas.1} parent=5 // pred_check_branch
        %189 = sbr.rel (%p186) target = $region32
      $region31: #{conv2d_pallas.1} parent=5 // pred_region
        %s190 = ssub.s32 %s14, 1
        %s191 = sand.u32 %s39, 1
        %s192 = scalar_lea.sflag [#allocation3], %s191
        %s193 = sand.u32 %s39, 1
        %s194 = smul.addr %s193, 48
        %s195 = scalar_lea.vmem [#allocation2], %s194
        // Predicated region
        $region33: #{conv2d_pallas.1} parent=31 // pred_check
          %p196 = pneg %p52
        $region34: #{conv2d_pallas.1} parent=31 // pred_check_branch
          %198 = sbr.rel (%p196) target = $region36
        $region35: #{conv2d_pallas.1} parent=31 // pred_region
          %199 = dma.done %s192, 768
        $region36: #{conv2d_pallas.1} parent=31 // pred_fallthru
          _
        // Predicated region
        $region37: #{conv2d_pallas.1} parent=31 // pred_check
          %p200 = pneg %p73
        $region38: #{conv2d_pallas.1} parent=31 // pred_check_branch
          %202 = sbr.rel (%p200) target = $region40
        $region39: #{conv2d_pallas.1} parent=31 // pred_region
          %203 = dma.done [#allocation4], 16
        $region40: #{conv2d_pallas.1} parent=31 // pred_fallthru
          _
        // Predicated region
        $region41: #{conv2d_pallas.1} parent=31 // pred_check
          %p204 = pneg %p94
        $region42: #{conv2d_pallas.1} parent=31 // pred_check_branch
          %206 = sbr.rel (%p204) target = $region44
        $region43: #{conv2d_pallas.1} parent=31 // pred_region
          %207 = dma.done [#allocation7], 16
        $region44: #{conv2d_pallas.1} parent=31 // pred_fallthru
          _
        %208 = sfence
        %s209 = sand.u32 %s39, 1
        %s210 = scalar_lea.sflag [#allocation3], %s209
        %s211 = sand.u32 %s39, 1
        %s212 = smul.addr %s211, 48
        %s213 = scalar_lea.vmem [#allocation2], %s212
        %p214 = pneg %p52
        %p215 = pneg %p49
        %p216 = pneg %p73
        %p217 = pneg %p70
        %p218 = pneg %p94
        %p219 = pneg %p91
        %p220 = pneg %p122
        %p221 = pneg %p119
        %s222 = sand.u32 %s109, 1
        %s223 = sand.u32 %s109, 1
        %s224 = smul.addr %s223, 48
        %s225 = scalar_lea.vmem [#allocation8], %s224
        %p226 = scmp.lt.s32.totalorder %s24, 1
        // Predicated region
        $region45: #{conv2d_pallas.1} parent=31 // pred_check
          %p227 = pneg %p226
        $region46: #{conv2d_pallas.1} parent=31 // pred_check_branch
          %229 = sbr.rel (%p227) target = $region48
        $region47: #{conv2d_pallas.1} parent=31 // pred_region
          %s230 = smul.u32 %s24, 8
          %s231 = sadd.s32 %s230, 0
          %s232 = sld [smem:[#allocation6]]
          %v233 = vstv %s232
          %s234 = sld [smem:[#allocation6 + $0x1]]
          %v235 = vstv %s234
          %s236 = sld [smem:[#allocation6 + $0x2]]
          %v237 = vstv %s236
          %s238 = sld [smem:[#allocation6 + $0x3]]
          %v239 = vstv %s238
          %s240 = sld [smem:[#allocation6 + $0x4]]
          %v241 = vstv %s240
          %s242 = sld [smem:[#allocation6 + $0x5]]
          %v243 = vstv %s242
          %s244 = scalar_lea.vmem %s195, %s231 [#allocation2]
          %v245 = vld [vmem:[%s244] sm:$0xff]
          %s246 = sld [smem:[#allocation5]]
          %v247 = vstv %s246
          %v248 = vmul.f32 %v247, %v245
          %v249 = vadd.f32 %v233, %v248
          %s250 = sld [smem:[#allocation5 + $0xc]]
          %v251 = vstv %s250
          %v252 = vmul.f32 %v251, %v245
          %v253 = vadd.f32 %v235, %v252
          %s254 = sld [smem:[#allocation5 + $0x18]]
          %v255 = vstv %s254
          %v256 = vmul.f32 %v255, %v245
          %v257 = vadd.f32 %v237, %v256
          %s258 = sld [smem:[#allocation5 + $0x24]]
          %v259 = vstv %s258
          %v260 = vmul.f32 %v259, %v245
          %v261 = vadd.f32 %v239, %v260
          %s262 = sld [smem:[#allocation5 + $0x30]]
          %v263 = vstv %s262
          %v264 = vmul.f32 %v263, %v245
          %v265 = vadd.f32 %v241, %v264
          %s266 = sld [smem:[#allocation5 + $0x3c]]
          %v267 = vstv %s266
          %v268 = vmul.f32 %v267, %v245
          %v269 = vadd.f32 %v243, %v268
          %s270 = sld [smem:[#allocation5 + $0x1]]
          %v271 = vstv %s270
          %v272 = vmul.f32 %v271, %v245
          %274 = vrot.lane.b32.xlu0 %v272, 127
          %v275 = vpop.permute.xlu0 %274
          %v277 = vadd.f32 %v249, %v275
          %s278 = sld [smem:[#allocation5 + $0xd]]
          %v279 = vstv %s278
          %v280 = vmul.f32 %v279, %v245
          %282 = vrot.lane.b32.xlu0 %v280, 127
          %v283 = vpop.permute.xlu0 %282
          %v285 = vadd.f32 %v253, %v283
          %s286 = sld [smem:[#allocation5 + $0x19]]
          %v287 = vstv %s286
          %v288 = vmul.f32 %v287, %v245
          %290 = vrot.lane.b32.xlu0 %v288, 127
          %v291 = vpop.permute.xlu0 %290
          %v293 = vadd.f32 %v257, %v291
          %s294 = sld [smem:[#allocation5 + $0x25]]
          %v295 = vstv %s294
          %v296 = vmul.f32 %v295, %v245
          %298 = vrot.lane.b32.xlu0 %v296, 127
          %v299 = vpop.permute.xlu0 %298
          %v301 = vadd.f32 %v261, %v299
          %s302 = sld [smem:[#allocation5 + $0x31]]
          %v303 = vstv %s302
          %v304 = vmul.f32 %v303, %v245
          %306 = vrot.lane.b32.xlu0 %v304, 127
          %v307 = vpop.permute.xlu0 %306
          %v309 = vadd.f32 %v265, %v307
          %s310 = sld [smem:[#allocation5 + $0x3d]]
          %v311 = vstv %s310
          %v312 = vmul.f32 %v311, %v245
          %314 = vrot.lane.b32.xlu0 %v312, 127
          %v315 = vpop.permute.xlu0 %314
          %v317 = vadd.f32 %v269, %v315
          %s318 = sadd.s32 %s231, 1
          %s319 = scalar_lea.vmem %s195, %s318 [#allocation2]
          %v320 = vld [vmem:[%s319] sm:$0xff]
          %s321 = sld [smem:[#allocation5 + $0x2]]
          %v322 = vstv %s321
          %v323 = vmul.f32 %v322, %v320
          %v324 = vadd.f32 %v277, %v323
          %s325 = sld [smem:[#allocation5 + $0xe]]
          %v326 = vstv %s325
          %v327 = vmul.f32 %v326, %v320
          %v328 = vadd.f32 %v285, %v327
          %s329 = sld [smem:[#allocation5 + $0x1a]]
          %v330 = vstv %s329
          %v331 = vmul.f32 %v330, %v320
          %v332 = vadd.f32 %v293, %v331
          %s333 = sld [smem:[#allocation5 + $0x26]]
          %v334 = vstv %s333
          %v335 = vmul.f32 %v334, %v320
          %v336 = vadd.f32 %v301, %v335
          %s337 = sld [smem:[#allocation5 + $0x32]]
          %v338 = vstv %s337
          %v339 = vmul.f32 %v338, %v320
          %v340 = vadd.f32 %v309, %v339
          %s341 = sld [smem:[#allocation5 + $0x3e]]
          %v342 = vstv %s341
          %v343 = vmul.f32 %v342, %v320
          %v344 = vadd.f32 %v317, %v343
          %s345 = sld [smem:[#allocation5 + $0x3]]
          %v346 = vstv %s345
          %v347 = vmul.f32 %v346, %v320
          %349 = vrot.lane.b32.xlu0 %v347, 127
          %v350 = vpop.permute.xlu0 %349
          %v352 = vadd.f32 %v324, %v350
          %s353 = sld [smem:[#allocation5 + $0xf]]
          %v354 = vstv %s353
          %v355 = vmul.f32 %v354, %v320
          %357 = vrot.lane.b32.xlu0 %v355, 127
          %v358 = vpop.permute.xlu0 %357
          %v360 = vadd.f32 %v328, %v358
          %s361 = sld [smem:[#allocation5 + $0x1b]]
          %v362 = vstv %s361
          %v363 = vmul.f32 %v362, %v320
          %365 = vrot.lane.b32.xlu0 %v363, 127
          %v366 = vpop.permute.xlu0 %365
          %v368 = vadd.f32 %v332, %v366
          %s369 = sld [smem:[#allocation5 + $0x27]]
          %v370 = vstv %s369
          %v371 = vmul.f32 %v370, %v320
          %373 = vrot.lane.b32.xlu0 %v371, 127
          %v374 = vpop.permute.xlu0 %373
          %v376 = vadd.f32 %v336, %v374
          %s377 = sld [smem:[#allocation5 + $0x33]]
          %v378 = vstv %s377
          %v379 = vmul.f32 %v378, %v320
          %381 = vrot.lane.b32.xlu0 %v379, 127
          %v382 = vpop.permute.xlu0 %381
          %v384 = vadd.f32 %v340, %v382
          %s385 = sld [smem:[#allocation5 + $0x3f]]
          %v386 = vstv %s385
          %v387 = vmul.f32 %v386, %v320
          %389 = vrot.lane.b32.xlu0 %v387, 127
          %v390 = vpop.permute.xlu0 %389
          %v392 = vadd.f32 %v344, %v390
          %s393 = sadd.s32 %s231, 16
          %s394 = scalar_lea.vmem %s195, %s393 [#allocation2]
          %v395 = vld [vmem:[%s394] sm:$0xff]
          %s396 = sld [smem:[#allocation5 + $0x4]]
          %v397 = vstv %s396
          %v398 = vmul.f32 %v397, %v395
          %v399 = vadd.f32 %v352, %v398
          %s400 = sld [smem:[#allocation5 + $0x10]]
          %v401 = vstv %s400
          %v402 = vmul.f32 %v401, %v395
          %v403 = vadd.f32 %v360, %v402
          %s404 = sld [smem:[#allocation5 + $0x1c]]
          %v405 = vstv %s404
          %v406 = vmul.f32 %v405, %v395
          %v407 = vadd.f32 %v368, %v406
          %s408 = sld [smem:[#allocation5 + $0x28]]
          %v409 = vstv %s408
          %v410 = vmul.f32 %v409, %v395
          %v411 = vadd.f32 %v376, %v410
          %s412 = sld [smem:[#allocation5 + $0x34]]
          %v413 = vstv %s412
          %v414 = vmul.f32 %v413, %v395
          %v415 = vadd.f32 %v384, %v414
          %s416 = sld [smem:[#allocation5 + $0x40]]
          %v417 = vstv %s416
          %v418 = vmul.f32 %v417, %v395
          %v419 = vadd.f32 %v392, %v418
          %s420 = sld [smem:[#allocation5 + $0x5]]
          %v421 = vstv %s420
          %v422 = vmul.f32 %v421, %v395
          %424 = vrot.lane.b32.xlu0 %v422, 127
          %v425 = vpop.permute.xlu0 %424
          %v427 = vadd.f32 %v399, %v425
          %s428 = sld [smem:[#allocation5 + $0x11]]
          %v429 = vstv %s428
          %v430 = vmul.f32 %v429, %v395
          %432 = vrot.lane.b32.xlu0 %v430, 127
          %v433 = vpop.permute.xlu0 %432
          %v435 = vadd.f32 %v403, %v433
          %s436 = sld [smem:[#allocation5 + $0x1d]]
          %v437 = vstv %s436
          %v438 = vmul.f32 %v437, %v395
          %440 = vrot.lane.b32.xlu0 %v438, 127
          %v441 = vpop.permute.xlu0 %440
          %v443 = vadd.f32 %v407, %v441
          %s444 = sld [smem:[#allocation5 + $0x29]]
          %v445 = vstv %s444
          %v446 = vmul.f32 %v445, %v395
          %448 = vrot.lane.b32.xlu0 %v446, 127
          %v449 = vpop.permute.xlu0 %448
          %v451 = vadd.f32 %v411, %v449
          %s452 = sld [smem:[#allocation5 + $0x35]]
          %v453 = vstv %s452
          %v454 = vmul.f32 %v453, %v395
          %456 = vrot.lane.b32.xlu0 %v454, 127
          %v457 = vpop.permute.xlu0 %456
          %v459 = vadd.f32 %v415, %v457
          %s460 = sld [smem:[#allocation5 + $0x41]]
          %v461 = vstv %s460
          %v462 = vmul.f32 %v461, %v395
          %464 = vrot.lane.b32.xlu0 %v462, 127
          %v465 = vpop.permute.xlu0 %464
          %v467 = vadd.f32 %v419, %v465
          %s468 = sadd.s32 %s318, 16
          %s469 = scalar_lea.vmem %s195, %s468 [#allocation2]
          %v470 = vld [vmem:[%s469] sm:$0xff]
          %s471 = sld [smem:[#allocation5 + $0x6]]
          %v472 = vstv %s471
          %v473 = vmul.f32 %v472, %v470
          %v474 = vadd.f32 %v427, %v473
          %s475 = sld [smem:[#allocation5 + $0x12]]
          %v476 = vstv %s475
          %v477 = vmul.f32 %v476, %v470
          %v478 = vadd.f32 %v435, %v477
          %s479 = sld [smem:[#allocation5 + $0x1e]]
          %v480 = vstv %s479
          %v481 = vmul.f32 %v480, %v470
          %v482 = vadd.f32 %v443, %v481
          %s483 = sld [smem:[#allocation5 + $0x2a]]
          %v484 = vstv %s483
          %v485 = vmul.f32 %v484, %v470
          %v486 = vadd.f32 %v451, %v485
          %s487 = sld [smem:[#allocation5 + $0x36]]
          %v488 = vstv %s487
          %v489 = vmul.f32 %v488, %v470
          %v490 = vadd.f32 %v459, %v489
          %s491 = sld [smem:[#allocation5 + $0x42]]
          %v492 = vstv %s491
          %v493 = vmul.f32 %v492, %v470
          %v494 = vadd.f32 %v467, %v493
          %s495 = sld [smem:[#allocation5 + $0x7]]
          %v496 = vstv %s495
          %v497 = vmul.f32 %v496, %v470
          %499 = vrot.lane.b32.xlu0 %v497, 127
          %v500 = vpop.permute.xlu0 %499
          %v502 = vadd.f32 %v474, %v500
          %s503 = sld [smem:[#allocation5 + $0x13]]
          %v504 = vstv %s503
          %v505 = vmul.f32 %v504, %v470
          %507 = vrot.lane.b32.xlu0 %v505, 127
          %v508 = vpop.permute.xlu0 %507
          %v510 = vadd.f32 %v478, %v508
          %s511 = sld [smem:[#allocation5 + $0x1f]]
          %v512 = vstv %s511
          %v513 = vmul.f32 %v512, %v470
          %515 = vrot.lane.b32.xlu0 %v513, 127
          %v516 = vpop.permute.xlu0 %515
          %v518 = vadd.f32 %v482, %v516
          %s519 = sld [smem:[#allocation5 + $0x2b]]
          %v520 = vstv %s519
          %v521 = vmul.f32 %v520, %v470
          %523 = vrot.lane.b32.xlu0 %v521, 127
          %v524 = vpop.permute.xlu0 %523
          %v526 = vadd.f32 %v486, %v524
          %s527 = sld [smem:[#allocation5 + $0x37]]
          %v528 = vstv %s527
          %v529 = vmul.f32 %v528, %v470
          %531 = vrot.lane.b32.xlu0 %v529, 127
          %v532 = vpop.permute.xlu0 %531
          %v534 = vadd.f32 %v490, %v532
          %s535 = sld [smem:[#allocation5 + $0x43]]
          %v536 = vstv %s535
          %v537 = vmul.f32 %v536, %v470
          %539 = vrot.lane.b32.xlu0 %v537, 127
          %v540 = vpop.permute.xlu0 %539
          %v542 = vadd.f32 %v494, %v540
          %s543 = sadd.s32 %s231, 32
          %s544 = scalar_lea.vmem %s195, %s543 [#allocation2]
          %v545 = vld [vmem:[%s544] sm:$0xff]
          %s546 = sld [smem:[#allocation5 + $0x8]]
          %v547 = vstv %s546
          %v548 = vmul.f32 %v547, %v545
          %v549 = vadd.f32 %v502, %v548
          %s550 = sld [smem:[#allocation5 + $0x14]]
          %v551 = vstv %s550
          %v552 = vmul.f32 %v551, %v545
          %v553 = vadd.f32 %v510, %v552
          %s554 = sld [smem:[#allocation5 + $0x20]]
          %v555 = vstv %s554
          %v556 = vmul.f32 %v555, %v545
          %v557 = vadd.f32 %v518, %v556
          %s558 = sld [smem:[#allocation5 + $0x2c]]
          %v559 = vstv %s558
          %v560 = vmul.f32 %v559, %v545
          %v561 = vadd.f32 %v526, %v560
          %s562 = sld [smem:[#allocation5 + $0x38]]
          %v563 = vstv %s562
          %v564 = vmul.f32 %v563, %v545
          %v565 = vadd.f32 %v534, %v564
          %s566 = sld [smem:[#allocation5 + $0x44]]
          %v567 = vstv %s566
          %v568 = vmul.f32 %v567, %v545
          %v569 = vadd.f32 %v542, %v568
          %s570 = sld [smem:[#allocation5 + $0x9]]
          %v571 = vstv %s570
          %v572 = vmul.f32 %v571, %v545
          %574 = vrot.lane.b32.xlu0 %v572, 127
          %v575 = vpop.permute.xlu0 %574
          %v577 = vadd.f32 %v549, %v575
          %s578 = sld [smem:[#allocation5 + $0x15]]
          %v579 = vstv %s578
          %v580 = vmul.f32 %v579, %v545
          %582 = vrot.lane.b32.xlu0 %v580, 127
          %v583 = vpop.permute.xlu0 %582
          %v585 = vadd.f32 %v553, %v583
          %s586 = sld [smem:[#allocation5 + $0x21]]
          %v587 = vstv %s586
          %v588 = vmul.f32 %v587, %v545
          %590 = vrot.lane.b32.xlu0 %v588, 127
          %v591 = vpop.permute.xlu0 %590
          %v593 = vadd.f32 %v557, %v591
          %s594 = sld [smem:[#allocation5 + $0x2d]]
          %v595 = vstv %s594
          %v596 = vmul.f32 %v595, %v545
          %598 = vrot.lane.b32.xlu0 %v596, 127
          %v599 = vpop.permute.xlu0 %598
          %v601 = vadd.f32 %v561, %v599
          %s602 = sld [smem:[#allocation5 + $0x39]]
          %v603 = vstv %s602
          %v604 = vmul.f32 %v603, %v545
          %606 = vrot.lane.b32.xlu0 %v604, 127
          %v607 = vpop.permute.xlu0 %606
          %v609 = vadd.f32 %v565, %v607
          %s610 = sld [smem:[#allocation5 + $0x45]]
          %v611 = vstv %s610
          %v612 = vmul.f32 %v611, %v545
          %614 = vrot.lane.b32.xlu0 %v612, 127
          %v615 = vpop.permute.xlu0 %614
          %v617 = vadd.f32 %v569, %v615
          %s618 = sadd.s32 %s318, 32
          %s619 = scalar_lea.vmem %s195, %s618 [#allocation2]
          %v620 = vld [vmem:[%s619] sm:$0xff]
          %s621 = sld [smem:[#allocation5 + $0xa]]
          %v622 = vstv %s621
          %v623 = vmul.f32 %v622, %v620
          %v624 = vadd.f32 %v577, %v623
          %s625 = sld [smem:[#allocation5 + $0x16]]
          %v626 = vstv %s625
          %v627 = vmul.f32 %v626, %v620
          %v628 = vadd.f32 %v585, %v627
          %s629 = sld [smem:[#allocation5 + $0x22]]
          %v630 = vstv %s629
          %v631 = vmul.f32 %v630, %v620
          %v632 = vadd.f32 %v593, %v631
          %s633 = sld [smem:[#allocation5 + $0x2e]]
          %v634 = vstv %s633
          %v635 = vmul.f32 %v634, %v620
          %v636 = vadd.f32 %v601, %v635
          %s637 = sld [smem:[#allocation5 + $0x3a]]
          %v638 = vstv %s637
          %v639 = vmul.f32 %v638, %v620
          %v640 = vadd.f32 %v609, %v639
          %s641 = sld [smem:[#allocation5 + $0x46]]
          %v642 = vstv %s641
          %v643 = vmul.f32 %v642, %v620
          %v644 = vadd.f32 %v617, %v643
          %s645 = sld [smem:[#allocation5 + $0xb]]
          %v646 = vstv %s645
          %v647 = vmul.f32 %v646, %v620
          %649 = vrot.lane.b32.xlu0 %v647, 127
          %v650 = vpop.permute.xlu0 %649
          %v652 = vadd.f32 %v624, %v650
          %s653 = sld [smem:[#allocation5 + $0x17]]
          %v654 = vstv %s653
          %v655 = vmul.f32 %v654, %v620
          %657 = vrot.lane.b32.xlu0 %v655, 127
          %v658 = vpop.permute.xlu0 %657
          %v660 = vadd.f32 %v628, %v658
          %s661 = sld [smem:[#allocation5 + $0x23]]
          %v662 = vstv %s661
          %v663 = vmul.f32 %v662, %v620
          %665 = vrot.lane.b32.xlu0 %v663, 127
          %v666 = vpop.permute.xlu0 %665
          %v668 = vadd.f32 %v632, %v666
          %s669 = sld [smem:[#allocation5 + $0x2f]]
          %v670 = vstv %s669
          %v671 = vmul.f32 %v670, %v620
          %673 = vrot.lane.b32.xlu0 %v671, 127
          %v674 = vpop.permute.xlu0 %673
          %v676 = vadd.f32 %v636, %v674
          %s677 = sld [smem:[#allocation5 + $0x3b]]
          %v678 = vstv %s677
          %v679 = vmul.f32 %v678, %v620
          %681 = vrot.lane.b32.xlu0 %v679, 127
          %v682 = vpop.permute.xlu0 %681
          %v684 = vadd.f32 %v640, %v682
          %s685 = sld [smem:[#allocation5 + $0x47]]
          %v686 = vstv %s685
          %v687 = vmul.f32 %v686, %v620
          %689 = vrot.lane.b32.xlu0 %v687, 127
          %v690 = vpop.permute.xlu0 %689
          %v692 = vadd.f32 %v644, %v690
          %vm693 = vcmask 121856
          %694 = vst.msk [vmem:[%s225] sm:$0xff] %vm693, %v652
          %s695 = sadd.s32 0, 8
          %s696 = scalar_lea.vmem %s225, %s695 [#allocation8]
          %697 = vst.msk [vmem:[%s696] sm:$0xff] %vm693, %v660
          %s698 = sadd.s32 0, 16
          %s699 = scalar_lea.vmem %s225, %s698 [#allocation8]
          %700 = vst.msk [vmem:[%s699] sm:$0xff] %vm693, %v668
          %s701 = sadd.s32 0, 24
          %s702 = scalar_lea.vmem %s225, %s701 [#allocation8]
          %703 = vst.msk [vmem:[%s702] sm:$0xff] %vm693, %v676
          %s704 = sadd.s32 0, 32
          %s705 = scalar_lea.vmem %s225, %s704 [#allocation8]
          %706 = vst.msk [vmem:[%s705] sm:$0xff] %vm693, %v684
          %s707 = sadd.s32 0, 40
          %s708 = scalar_lea.vmem %s225, %s707 [#allocation8]
          %709 = vst.msk [vmem:[%s708] sm:$0xff] %vm693, %v692
        $region48: #{conv2d_pallas.1} parent=31 // pred_fallthru
          _
        %p710 = scmp.eq.s32.totalorder %s24, 1
        // Predicated region
        $region49: #{conv2d_pallas.1} parent=31 // pred_check
          %p711 = pneg %p710
        $region50: #{conv2d_pallas.1} parent=31 // pred_check_branch
          %713 = sbr.rel (%p711) target = $region52
        $region51: #{conv2d_pallas.1} parent=31 // pred_region
          %s714 = sld [smem:[#allocation6]]
          %v715 = vstv %s714
          %s716 = sld [smem:[#allocation6 + $0x1]]
          %v717 = vstv %s716
          %s718 = sld [smem:[#allocation6 + $0x2]]
          %v719 = vstv %s718
          %s720 = sld [smem:[#allocation6 + $0x3]]
          %v721 = vstv %s720
          %s722 = sld [smem:[#allocation6 + $0x4]]
          %v723 = vstv %s722
          %s724 = sld [smem:[#allocation6 + $0x5]]
          %v725 = vstv %s724
          %v726 = vld [vmem:[%s195 + $0x8] sm:$0x7f]
          %s727 = sld [smem:[#allocation5]]
          %v728 = vstv %s727
          %v729 = vmul.f32 %v728, %v726
          %v730 = vadd.f32 %v715, %v729
          %s731 = sld [smem:[#allocation5 + $0xc]]
          %v732 = vstv %s731
          %v733 = vmul.f32 %v732, %v726
          %v734 = vadd.f32 %v717, %v733
          %s735 = sld [smem:[#allocation5 + $0x18]]
          %v736 = vstv %s735
          %v737 = vmul.f32 %v736, %v726
          %v738 = vadd.f32 %v719, %v737
          %s739 = sld [smem:[#allocation5 + $0x24]]
          %v740 = vstv %s739
          %v741 = vmul.f32 %v740, %v726
          %v742 = vadd.f32 %v721, %v741
          %s743 = sld [smem:[#allocation5 + $0x30]]
          %v744 = vstv %s743
          %v745 = vmul.f32 %v744, %v726
          %v746 = vadd.f32 %v723, %v745
          %s747 = sld [smem:[#allocation5 + $0x3c]]
          %v748 = vstv %s747
          %v749 = vmul.f32 %v748, %v726
          %v750 = vadd.f32 %v725, %v749
          %s751 = sld [smem:[#allocation5 + $0x1]]
          %v752 = vstv %s751
          %v753 = vmul.f32 %v752, %v726
          %755 = vrot.lane.b32.xlu0 %v753, 127
          %v756 = vpop.permute.xlu0 %755
          %v758 = vadd.f32 %v730, %v756
          %s759 = sld [smem:[#allocation5 + $0xd]]
          %v760 = vstv %s759
          %v761 = vmul.f32 %v760, %v726
          %763 = vrot.lane.b32.xlu0 %v761, 127
          %v764 = vpop.permute.xlu0 %763
          %v766 = vadd.f32 %v734, %v764
          %s767 = sld [smem:[#allocation5 + $0x19]]
          %v768 = vstv %s767
          %v769 = vmul.f32 %v768, %v726
          %771 = vrot.lane.b32.xlu0 %v769, 127
          %v772 = vpop.permute.xlu0 %771
          %v774 = vadd.f32 %v738, %v772
          %s775 = sld [smem:[#allocation5 + $0x25]]
          %v776 = vstv %s775
          %v777 = vmul.f32 %v776, %v726
          %779 = vrot.lane.b32.xlu0 %v777, 127
          %v780 = vpop.permute.xlu0 %779
          %v782 = vadd.f32 %v742, %v780
          %s783 = sld [smem:[#allocation5 + $0x31]]
          %v784 = vstv %s783
          %v785 = vmul.f32 %v784, %v726
          %787 = vrot.lane.b32.xlu0 %v785, 127
          %v788 = vpop.permute.xlu0 %787
          %v790 = vadd.f32 %v746, %v788
          %s791 = sld [smem:[#allocation5 + $0x3d]]
          %v792 = vstv %s791
          %v793 = vmul.f32 %v792, %v726
          %795 = vrot.lane.b32.xlu0 %v793, 127
          %v796 = vpop.permute.xlu0 %795
          %v798 = vadd.f32 %v750, %v796
          %v799 = vld [vmem:[%s195 + $0x9] sm:$0x7f]
          %s800 = sld [smem:[#allocation5 + $0x2]]
          %v801 = vstv %s800
          %v802 = vmul.f32 %v801, %v799
          %v803 = vadd.f32 %v758, %v802
          %s804 = sld [smem:[#allocation5 + $0xe]]
          %v805 = vstv %s804
          %v806 = vmul.f32 %v805, %v799
          %v807 = vadd.f32 %v766, %v806
          %s808 = sld [smem:[#allocation5 + $0x1a]]
          %v809 = vstv %s808
          %v810 = vmul.f32 %v809, %v799
          %v811 = vadd.f32 %v774, %v810
          %s812 = sld [smem:[#allocation5 + $0x26]]
          %v813 = vstv %s812
          %v814 = vmul.f32 %v813, %v799
          %v815 = vadd.f32 %v782, %v814
          %s816 = sld [smem:[#allocation5 + $0x32]]
          %v817 = vstv %s816
          %v818 = vmul.f32 %v817, %v799
          %v819 = vadd.f32 %v790, %v818
          %s820 = sld [smem:[#allocation5 + $0x3e]]
          %v821 = vstv %s820
          %v822 = vmul.f32 %v821, %v799
          %v823 = vadd.f32 %v798, %v822
          %s824 = sld [smem:[#allocation5 + $0x3]]
          %v825 = vstv %s824
          %v826 = vmul.f32 %v825, %v799
          %828 = vrot.lane.b32.xlu0 %v826, 127
          %v829 = vpop.permute.xlu0 %828
          %v831 = vadd.f32 %v803, %v829
          %s832 = sld [smem:[#allocation5 + $0xf]]
          %v833 = vstv %s832
          %v834 = vmul.f32 %v833, %v799
          %836 = vrot.lane.b32.xlu0 %v834, 127
          %v837 = vpop.permute.xlu0 %836
          %v839 = vadd.f32 %v807, %v837
          %s840 = sld [smem:[#allocation5 + $0x1b]]
          %v841 = vstv %s840
          %v842 = vmul.f32 %v841, %v799
          %844 = vrot.lane.b32.xlu0 %v842, 127
          %v845 = vpop.permute.xlu0 %844
          %v847 = vadd.f32 %v811, %v845
          %s848 = sld [smem:[#allocation5 + $0x27]]
          %v849 = vstv %s848
          %v850 = vmul.f32 %v849, %v799
          %852 = vrot.lane.b32.xlu0 %v850, 127
          %v853 = vpop.permute.xlu0 %852
          %v855 = vadd.f32 %v815, %v853
          %s856 = sld [smem:[#allocation5 + $0x33]]
          %v857 = vstv %s856
          %v858 = vmul.f32 %v857, %v799
          %860 = vrot.lane.b32.xlu0 %v858, 127
          %v861 = vpop.permute.xlu0 %860
          %v863 = vadd.f32 %v819, %v861
          %s864 = sld [smem:[#allocation5 + $0x3f]]
          %v865 = vstv %s864
          %v866 = vmul.f32 %v865, %v799
          %868 = vrot.lane.b32.xlu0 %v866, 127
          %v869 = vpop.permute.xlu0 %868
          %v871 = vadd.f32 %v823, %v869
          %s872 = scalar_lea.vmem %s195, 16 [#allocation2]
          %v873 = vld [vmem:[%s872 + $0x8] sm:$0x7f]
          %s874 = sld [smem:[#allocation5 + $0x4]]
          %v875 = vstv %s874
          %v876 = vmul.f32 %v875, %v873
          %v877 = vadd.f32 %v831, %v876
          %s878 = sld [smem:[#allocation5 + $0x10]]
          %v879 = vstv %s878
          %v880 = vmul.f32 %v879, %v873
          %v881 = vadd.f32 %v839, %v880
          %s882 = sld [smem:[#allocation5 + $0x1c]]
          %v883 = vstv %s882
          %v884 = vmul.f32 %v883, %v873
          %v885 = vadd.f32 %v847, %v884
          %s886 = sld [smem:[#allocation5 + $0x28]]
          %v887 = vstv %s886
          %v888 = vmul.f32 %v887, %v873
          %v889 = vadd.f32 %v855, %v888
          %s890 = sld [smem:[#allocation5 + $0x34]]
          %v891 = vstv %s890
          %v892 = vmul.f32 %v891, %v873
          %v893 = vadd.f32 %v863, %v892
          %s894 = sld [smem:[#allocation5 + $0x40]]
          %v895 = vstv %s894
          %v896 = vmul.f32 %v895, %v873
          %v897 = vadd.f32 %v871, %v896
          %s898 = sld [smem:[#allocation5 + $0x5]]
          %v899 = vstv %s898
          %v900 = vmul.f32 %v899, %v873
          %902 = vrot.lane.b32.xlu0 %v900, 127
          %v903 = vpop.permute.xlu0 %902
          %v905 = vadd.f32 %v877, %v903
          %s906 = sld [smem:[#allocation5 + $0x11]]
          %v907 = vstv %s906
          %v908 = vmul.f32 %v907, %v873
          %910 = vrot.lane.b32.xlu0 %v908, 127
          %v911 = vpop.permute.xlu0 %910
          %v913 = vadd.f32 %v881, %v911
          %s914 = sld [smem:[#allocation5 + $0x1d]]
          %v915 = vstv %s914
          %v916 = vmul.f32 %v915, %v873
          %918 = vrot.lane.b32.xlu0 %v916, 127
          %v919 = vpop.permute.xlu0 %918
          %v921 = vadd.f32 %v885, %v919
          %s922 = sld [smem:[#allocation5 + $0x29]]
          %v923 = vstv %s922
          %v924 = vmul.f32 %v923, %v873
          %926 = vrot.lane.b32.xlu0 %v924, 127
          %v927 = vpop.permute.xlu0 %926
          %v929 = vadd.f32 %v889, %v927
          %s930 = sld [smem:[#allocation5 + $0x35]]
          %v931 = vstv %s930
          %v932 = vmul.f32 %v931, %v873
          %934 = vrot.lane.b32.xlu0 %v932, 127
          %v935 = vpop.permute.xlu0 %934
          %v937 = vadd.f32 %v893, %v935
          %s938 = sld [smem:[#allocation5 + $0x41]]
          %v939 = vstv %s938
          %v940 = vmul.f32 %v939, %v873
          %942 = vrot.lane.b32.xlu0 %v940, 127
          %v943 = vpop.permute.xlu0 %942
          %v945 = vadd.f32 %v897, %v943
          %v946 = vld [vmem:[%s872 + $0x9] sm:$0x7f]
          %s947 = sld [smem:[#allocation5 + $0x6]]
          %v948 = vstv %s947
          %v949 = vmul.f32 %v948, %v946
          %v950 = vadd.f32 %v905, %v949
          %s951 = sld [smem:[#allocation5 + $0x12]]
          %v952 = vstv %s951
          %v953 = vmul.f32 %v952, %v946
          %v954 = vadd.f32 %v913, %v953
          %s955 = sld [smem:[#allocation5 + $0x1e]]
          %v956 = vstv %s955
          %v957 = vmul.f32 %v956, %v946
          %v958 = vadd.f32 %v921, %v957
          %s959 = sld [smem:[#allocation5 + $0x2a]]
          %v960 = vstv %s959
          %v961 = vmul.f32 %v960, %v946
          %v962 = vadd.f32 %v929, %v961
          %s963 = sld [smem:[#allocation5 + $0x36]]
          %v964 = vstv %s963
          %v965 = vmul.f32 %v964, %v946
          %v966 = vadd.f32 %v937, %v965
          %s967 = sld [smem:[#allocation5 + $0x42]]
          %v968 = vstv %s967
          %v969 = vmul.f32 %v968, %v946
          %v970 = vadd.f32 %v945, %v969
          %s971 = sld [smem:[#allocation5 + $0x7]]
          %v972 = vstv %s971
          %v973 = vmul.f32 %v972, %v946
          %975 = vrot.lane.b32.xlu0 %v973, 127
          %v976 = vpop.permute.xlu0 %975
          %v978 = vadd.f32 %v950, %v976
          %s979 = sld [smem:[#allocation5 + $0x13]]
          %v980 = vstv %s979
          %v981 = vmul.f32 %v980, %v946
          %983 = vrot.lane.b32.xlu0 %v981, 127
          %v984 = vpop.permute.xlu0 %983
          %v986 = vadd.f32 %v954, %v984
          %s987 = sld [smem:[#allocation5 + $0x1f]]
          %v988 = vstv %s987
          %v989 = vmul.f32 %v988, %v946
          %991 = vrot.lane.b32.xlu0 %v989, 127
          %v992 = vpop.permute.xlu0 %991
          %v994 = vadd.f32 %v958, %v992
          %s995 = sld [smem:[#allocation5 + $0x2b]]
          %v996 = vstv %s995
          %v997 = vmul.f32 %v996, %v946
          %999 = vrot.lane.b32.xlu0 %v997, 127
          %v1000 = vpop.permute.xlu0 %999
          %v1002 = vadd.f32 %v962, %v1000
          %s1003 = sld [smem:[#allocation5 + $0x37]]
          %v1004 = vstv %s1003
          %v1005 = vmul.f32 %v1004, %v946
          %1007 = vrot.lane.b32.xlu0 %v1005, 127
          %v1008 = vpop.permute.xlu0 %1007
          %v1010 = vadd.f32 %v966, %v1008
          %s1011 = sld [smem:[#allocation5 + $0x43]]
          %v1012 = vstv %s1011
          %v1013 = vmul.f32 %v1012, %v946
          %1015 = vrot.lane.b32.xlu0 %v1013, 127
          %v1016 = vpop.permute.xlu0 %1015
          %v1018 = vadd.f32 %v970, %v1016
          %s1019 = scalar_lea.vmem %s195, 32 [#allocation2]
          %v1020 = vld [vmem:[%s1019 + $0x8] sm:$0x7f]
          %s1021 = sld [smem:[#allocation5 + $0x8]]
          %v1022 = vstv %s1021
          %v1023 = vmul.f32 %v1022, %v1020
          %v1024 = vadd.f32 %v978, %v1023
          %s1025 = sld [smem:[#allocation5 + $0x14]]
          %v1026 = vstv %s1025
          %v1027 = vmul.f32 %v1026, %v1020
          %v1028 = vadd.f32 %v986, %v1027
          %s1029 = sld [smem:[#allocation5 + $0x20]]
          %v1030 = vstv %s1029
          %v1031 = vmul.f32 %v1030, %v1020
          %v1032 = vadd.f32 %v994, %v1031
          %s1033 = sld [smem:[#allocation5 + $0x2c]]
          %v1034 = vstv %s1033
          %v1035 = vmul.f32 %v1034, %v1020
          %v1036 = vadd.f32 %v1002, %v1035
          %s1037 = sld [smem:[#allocation5 + $0x38]]
          %v1038 = vstv %s1037
          %v1039 = vmul.f32 %v1038, %v1020
          %v1040 = vadd.f32 %v1010, %v1039
          %s1041 = sld [smem:[#allocation5 + $0x44]]
          %v1042 = vstv %s1041
          %v1043 = vmul.f32 %v1042, %v1020
          %v1044 = vadd.f32 %v1018, %v1043
          %s1045 = sld [smem:[#allocation5 + $0x9]]
          %v1046 = vstv %s1045
          %v1047 = vmul.f32 %v1046, %v1020
          %1049 = vrot.lane.b32.xlu0 %v1047, 127
          %v1050 = vpop.permute.xlu0 %1049
          %v1052 = vadd.f32 %v1024, %v1050
          %s1053 = sld [smem:[#allocation5 + $0x15]]
          %v1054 = vstv %s1053
          %v1055 = vmul.f32 %v1054, %v1020
          %1057 = vrot.lane.b32.xlu0 %v1055, 127
          %v1058 = vpop.permute.xlu0 %1057
          %v1060 = vadd.f32 %v1028, %v1058
          %s1061 = sld [smem:[#allocation5 + $0x21]]
          %v1062 = vstv %s1061
          %v1063 = vmul.f32 %v1062, %v1020
          %1065 = vrot.lane.b32.xlu0 %v1063, 127
          %v1066 = vpop.permute.xlu0 %1065
          %v1068 = vadd.f32 %v1032, %v1066
          %s1069 = sld [smem:[#allocation5 + $0x2d]]
          %v1070 = vstv %s1069
          %v1071 = vmul.f32 %v1070, %v1020
          %1073 = vrot.lane.b32.xlu0 %v1071, 127
          %v1074 = vpop.permute.xlu0 %1073
          %v1076 = vadd.f32 %v1036, %v1074
          %s1077 = sld [smem:[#allocation5 + $0x39]]
          %v1078 = vstv %s1077
          %v1079 = vmul.f32 %v1078, %v1020
          %1081 = vrot.lane.b32.xlu0 %v1079, 127
          %v1082 = vpop.permute.xlu0 %1081
          %v1084 = vadd.f32 %v1040, %v1082
          %s1085 = sld [smem:[#allocation5 + $0x45]]
          %v1086 = vstv %s1085
          %v1087 = vmul.f32 %v1086, %v1020
          %1089 = vrot.lane.b32.xlu0 %v1087, 127
          %v1090 = vpop.permute.xlu0 %1089
          %v1092 = vadd.f32 %v1044, %v1090
          %v1093 = vld [vmem:[%s1019 + $0x9] sm:$0x7f]
          %s1094 = sld [smem:[#allocation5 + $0xa]]
          %v1095 = vstv %s1094
          %v1096 = vmul.f32 %v1095, %v1093
          %v1097 = vadd.f32 %v1052, %v1096
          %s1098 = sld [smem:[#allocation5 + $0x16]]
          %v1099 = vstv %s1098
          %v1100 = vmul.f32 %v1099, %v1093
          %v1101 = vadd.f32 %v1060, %v1100
          %s1102 = sld [smem:[#allocation5 + $0x22]]
          %v1103 = vstv %s1102
          %v1104 = vmul.f32 %v1103, %v1093
          %v1105 = vadd.f32 %v1068, %v1104
          %s1106 = sld [smem:[#allocation5 + $0x2e]]
          %v1107 = vstv %s1106
          %v1108 = vmul.f32 %v1107, %v1093
          %v1109 = vadd.f32 %v1076, %v1108
          %s1110 = sld [smem:[#allocation5 + $0x3a]]
          %v1111 = vstv %s1110
          %v1112 = vmul.f32 %v1111, %v1093
          %v1113 = vadd.f32 %v1084, %v1112
          %s1114 = sld [smem:[#allocation5 + $0x46]]
          %v1115 = vstv %s1114
          %v1116 = vmul.f32 %v1115, %v1093
          %v1117 = vadd.f32 %v1092, %v1116
          %s1118 = sld [smem:[#allocation5 + $0xb]]
          %v1119 = vstv %s1118
          %v1120 = vmul.f32 %v1119, %v1093
          %1122 = vrot.lane.b32.xlu0 %v1120, 127
          %v1123 = vpop.permute.xlu0 %1122
          %v1125 = vadd.f32 %v1097, %v1123
          %s1126 = sld [smem:[#allocation5 + $0x17]]
          %v1127 = vstv %s1126
          %v1128 = vmul.f32 %v1127, %v1093
          %1130 = vrot.lane.b32.xlu0 %v1128, 127
          %v1131 = vpop.permute.xlu0 %1130
          %v1133 = vadd.f32 %v1101, %v1131
          %s1134 = sld [smem:[#allocation5 + $0x23]]
          %v1135 = vstv %s1134
          %v1136 = vmul.f32 %v1135, %v1093
          %1138 = vrot.lane.b32.xlu0 %v1136, 127
          %v1139 = vpop.permute.xlu0 %1138
          %v1141 = vadd.f32 %v1105, %v1139
          %s1142 = sld [smem:[#allocation5 + $0x2f]]
          %v1143 = vstv %s1142
          %v1144 = vmul.f32 %v1143, %v1093
          %1146 = vrot.lane.b32.xlu0 %v1144, 127
          %v1147 = vpop.permute.xlu0 %1146
          %v1149 = vadd.f32 %v1109, %v1147
          %s1150 = sld [smem:[#allocation5 + $0x3b]]
          %v1151 = vstv %s1150
          %v1152 = vmul.f32 %v1151, %v1093
          %1154 = vrot.lane.b32.xlu0 %v1152, 127
          %v1155 = vpop.permute.xlu0 %1154
          %v1157 = vadd.f32 %v1113, %v1155
          %s1158 = sld [smem:[#allocation5 + $0x47]]
          %v1159 = vstv %s1158
          %v1160 = vmul.f32 %v1159, %v1093
          %1162 = vrot.lane.b32.xlu0 %v1160, 127
          %v1163 = vpop.permute.xlu0 %1162
          %v1165 = vadd.f32 %v1117, %v1163
          %vm1166 = vcmask 120832
          %1167 = vst.msk [vmem:[%s225] sm:$0x7f] %vm1166, %v1125
          %s1168 = scalar_lea.vmem %s225, 8 [#allocation8]
          %1169 = vst.msk [vmem:[%s1168] sm:$0x7f] %vm1166, %v1133
          %s1170 = scalar_lea.vmem %s225, 16 [#allocation8]
          %1171 = vst.msk [vmem:[%s1170] sm:$0x7f] %vm1166, %v1141
          %s1172 = scalar_lea.vmem %s225, 24 [#allocation8]
          %1173 = vst.msk [vmem:[%s1172] sm:$0x7f] %vm1166, %v1149
          %s1174 = scalar_lea.vmem %s225, 32 [#allocation8]
          %1175 = vst.msk [vmem:[%s1174] sm:$0x7f] %vm1166, %v1157
          %s1176 = scalar_lea.vmem %s225, 40 [#allocation8]
          %1177 = vst.msk [vmem:[%s1176] sm:$0x7f] %vm1166, %v1165
        $region52: #{conv2d_pallas.1} parent=31 // pred_fallthru
          _
        %s1178 = sand.u32 %s109, 1
        %s1179 = sand.u32 %s109, 1
        %s1180 = smul.addr %s1179, 48
        %s1181 = scalar_lea.vmem [#allocation8], %s1180
        // Predicated region
        $region53: #{conv2d_pallas.1} parent=31 // pred_check
          %p1182 = pneg %p119
        $region54: #{conv2d_pallas.1} parent=31 // pred_check_branch
          %1184 = sbr.rel (%p1182) target = $region56
        $region55: #{conv2d_pallas.1} parent=31 // pred_region
          %s1185 = smul.addr %s23, 12
          %s1186 = sadd.s32 %s24, %s1185
          %s1187 = smul.addr %s1186, 8
          %s1188 = scalar_lea.vmem %s3, %s1187
          // Predicated region
          $region57: #{conv2d_pallas.1} parent=55 // pred_check
            _
          $region58: #{conv2d_pallas.1} parent=55 // pred_check_branch
            %1190 = sbr.rel (0) target = $region60
          $region59: #{conv2d_pallas.1} parent=55 // pred_region
            // Predicated region
            $region61: #{conv2d_pallas.1} parent=59 // pred_check
              _
            $region62: #{conv2d_pallas.1} parent=59 // pred_check_branch
              %1192 = sbr.rel (0) target = $region64
            $region63: #{conv2d_pallas.1} parent=59 // pred_region
              // Predicated region
              $region76: #{conv2d_pallas.1} parent=63 // pred_check
                _
              $region77: #{conv2d_pallas.1} parent=63 // pred_check_branch
                %1217 = sbr.rel (0) target = $region79
              $region78: #{conv2d_pallas.1} parent=63 // pred_region
                loop: start=0, step=1, limit=1
                $region80: #{conv2d_pallas.1} parent=78 // loop_pre_header
                  _
                $region81: #{conv2d_pallas.1} parent=78 // loop_header
                  %s1219 = sphi 0, %s1223
                  %p1220 = scmp.ge.s32.totalorder %s1219, 1
                  %s1224 = sphi %s1181, %s1181
                  %s1225 = sphi %s1188, %s1188
                $region82: #{conv2d_pallas.1} parent=78 // loop_header_branch
                  %1222 = sbr.rel (%p1220) target = $region86
                $region83: #{conv2d_pallas.1} parent=78 // loop_body
                  %v1226 = vld [vmem:[%s1224] sm:$0xff]
                  %1227 = vst [vmem:[%s1225] sm:$0xff] %v1226
                  %v1228 = vld [vmem:[%s1224 + $0x8] sm:$0xff]
                  %1229 = vst [vmem:[%s1225 + $0x10] sm:$0xff] %v1228
                  %v1230 = vld [vmem:[%s1224 + $0x10] sm:$0xff]
                  %1231 = vst [vmem:[%s1225 + $0x20] sm:$0xff] %v1230
                  %v1232 = vld [vmem:[%s1224 + $0x18] sm:$0xff]
                  %1233 = vst [vmem:[%s1225 + $0x30] sm:$0xff] %v1232
                  %v1234 = vld [vmem:[%s1224 + $0x20] sm:$0xff]
                  %1235 = vst [vmem:[%s1225 + $0x40] sm:$0xff] %v1234
                  %v1236 = vld [vmem:[%s1224 + $0x28] sm:$0xff]
                  %1237 = vst [vmem:[%s1225 + $0x50] sm:$0xff] %v1236
                $region84: #{conv2d_pallas.1} parent=78 // loop_footer
                  %s1223 = sadd.s32 1, %s1219
                $region85: #{conv2d_pallas.1} parent=78 // loop_footer_branch
                  %1218 = sbr.rel target = $region81
                $region86: #{conv2d_pallas.1} parent=78 // loop_exit
                  _
              $region79: #{conv2d_pallas.1} parent=63 // pred_fallthru
                _
              // Predicated region
              $region87: #{conv2d_pallas.1} parent=63 // pred_check
                _
              $region88: #{conv2d_pallas.1} parent=63 // pred_check_branch
                %1239 = sbr.rel target = $region90
              $region89: #{conv2d_pallas.1} parent=63 // pred_region
                _
              $region90: #{conv2d_pallas.1} parent=63 // pred_fallthru
                _
            $region64: #{conv2d_pallas.1} parent=59 // pred_fallthru
              _
            // Predicated region
            $region65: #{conv2d_pallas.1} parent=59 // pred_check
              _
            $region66: #{conv2d_pallas.1} parent=59 // pred_check_branch
              %1194 = sbr.rel target = $region68
            $region67: #{conv2d_pallas.1} parent=59 // pred_region
              loop: start=0, step=1, limit=1
              $region69: #{conv2d_pallas.1} parent=67 // loop_pre_header
                _
              $region70: #{conv2d_pallas.1} parent=67 // loop_header
                %s1197 = sphi 0, %s1201
                %p1198 = scmp.ge.s32.totalorder %s1197, 1
                %s1202 = sphi %s1181, %s1181
                %s1203 = sphi %s1188, %s1188
              $region71: #{conv2d_pallas.1} parent=67 // loop_header_branch
                %1200 = sbr.rel (%p1198) target = $region75
              $region72: #{conv2d_pallas.1} parent=67 // loop_body
                %v1204 = vld [vmem:[%s1202] sm:$0xff]
                %1205 = vst [vmem:[%s1203] sm:$0xff] %v1204
                %v1206 = vld [vmem:[%s1202 + $0x8] sm:$0xff]
                %1207 = vst [vmem:[%s1203 + $0x10] sm:$0xff] %v1206
                %v1208 = vld [vmem:[%s1202 + $0x10] sm:$0xff]
                %1209 = vst [vmem:[%s1203 + $0x20] sm:$0xff] %v1208
                %v1210 = vld [vmem:[%s1202 + $0x18] sm:$0xff]
                %1211 = vst [vmem:[%s1203 + $0x30] sm:$0xff] %v1210
                %v1212 = vld [vmem:[%s1202 + $0x20] sm:$0xff]
                %1213 = vst [vmem:[%s1203 + $0x40] sm:$0xff] %v1212
                %v1214 = vld [vmem:[%s1202 + $0x28] sm:$0xff]
                %1215 = vst [vmem:[%s1203 + $0x50] sm:$0xff] %v1214
              $region73: #{conv2d_pallas.1} parent=67 // loop_footer
                %s1201 = sadd.s32 1, %s1197
              $region74: #{conv2d_pallas.1} parent=67 // loop_footer_branch
                %1196 = sbr.rel target = $region70
              $region75: #{conv2d_pallas.1} parent=67 // loop_exit
                _
            $region68: #{conv2d_pallas.1} parent=59 // pred_fallthru
              _
          $region60: #{conv2d_pallas.1} parent=55 // pred_fallthru
            _
          %1240 = vnop
        $region56: #{conv2d_pallas.1} parent=31 // pred_fallthru
          _
      $region32: #{conv2d_pallas.1} parent=5 // pred_fallthru
        _
      %p1241 = scmp.le.s32.totalorder 2, %s14
      // Predicated region
      $region91: #{conv2d_pallas.1} parent=5 // pred_check
        %p1242 = pneg %p1241
      $region92: #{conv2d_pallas.1} parent=5 // pred_check_branch
        %1244 = sbr.rel (%p1242) target = $region94
      $region93: #{conv2d_pallas.1} parent=5 // pred_region
        %s1245 = ssub.s32 %s14, 2
        // Predicated region
        $region95: #{conv2d_pallas.1} parent=93 // pred_check
          %p1246 = pneg %p125
        $region96: #{conv2d_pallas.1} parent=93 // pred_check_branch
          %1248 = sbr.rel (%p1246) target = $region98
        $region97: #{conv2d_pallas.1} parent=93 // pred_region
          %s1249 = sand.u32 %s110, 1
          %s1250 = sand.u32 %s110, 1
          %s1251 = smul.addr %s1250, 48
          %s1252 = scalar_lea.vmem [#allocation8], %s1251
        $region98: #{conv2d_pallas.1} parent=93 // pred_fallthru
          _
      $region94: #{conv2d_pallas.1} parent=5 // pred_fallthru
        _
    $region6: #{conv2d_pallas.1} parent=1 // loop_footer
      %s18 = sadd.s32 1, %s14
    $region7: #{conv2d_pallas.1} parent=1 // loop_footer_branch
      %13 = sbr.rel target = $region3
    $region8: #{conv2d_pallas.1} parent=1 // loop_exit
      _
    %1253 = vsyncpa [#allocation3], 1
    %s1254 = scalar_lea.sflag [#allocation3], 1
    %1255 = vsyncpa %s1254, 1
    %1256 = vsyncpa [#allocation4], 1
    %s1257 = scalar_lea.sflag [#allocation4], 1
    %1258 = vsyncpa %s1257, 1
    %1259 = vsyncpa [#allocation7], 1

</llo_original>
